<compile_context>
chip_gen: v6e
topology: v6e:2x2x1
jax: 0.10.0
libtpu: 0.0.40
codegen_flags: <defaults>
</compile_context>

<pallas_src>
import jax
import jax.numpy as jnp
from jax import lax
from jax.experimental import pallas as pl
from jax.experimental.pallas import tpu as pltpu


_LANE = 128
_VMEM_BUDGET = 40 * 1024 * 1024   # conservative across v5e / v6e / v7x


def _round_up(x, m):
    return ((x + m - 1) // m) * m


def net_kernel(x_ref, wc_ref, bc_ref, wf_ref, bf_ref, o_ref):
    """Fused conv(full-extent)+sigmoid+relu+fc for one batch tile."""
    # "NT" contraction (contract the last dim of both operands) -> no transposes.
    dn = (((1,), (1,)), ((), ()))

    def slab(x_tile):
        # conv1 as matmul on the MXU: (m, CHW)[bf16] x (CP, CHW)[bf16]^T -> f32
        y = lax.dot_general(x_tile, wc_ref[...], dn,
                            preferred_element_type=jnp.float32)
        y = y + bc_ref[...]                               # (m, CP) + (1, CP)
        # sigmoid (EUP) + relu (VPU), in f32
        a = jax.nn.sigmoid(y) + jnp.maximum(y, 0.0)
        # fc1: (m, CP)[bf16] x (KP, CP)[bf16]^T -> f32.  Padded CP columns of
        # wf are zero, so the sigmoid(0)+relu(0)=0.5 pad activations cancel.
        out = lax.dot_general(a.astype(wf_ref.dtype), wf_ref[...], dn,
                              preferred_element_type=jnp.float32)
        return (out + bf_ref[...]).astype(o_ref.dtype)

    tm = x_ref.shape[0]
    sub = 128
    if tm <= sub:
        o_ref[...] = slab(x_ref[...])
    else:
        # Process the tile in 128-row sub-slabs so the f32 y/a intermediates
        # stay inside the vreg file (no spills at TM = 256 / 512).
        def body(s, carry):
            r0 = pl.multiple_of(s * sub, sub)
            o_ref[pl.ds(r0, sub), :] = slab(x_ref[pl.ds(r0, sub), :])
            return carry
        lax.fori_loop(0, tm // sub, body, 0)


def _pick_batch_tile(N, CHW, CP, KP):
    """Largest batch tile that fits the VMEM budget; >=2 grid steps when possible."""
    def vmem_bytes(tm, weight_bufs):
        b = 2 * tm * CHW * 2                       # x tile, double-buffered, bf16
        b += weight_bufs * CP * CHW * 2            # conv weight block(s), bf16
        b += weight_bufs * (KP * CP * 2 + CP * 4 + KP * 4)
        b += 2 * tm * KP * 4                       # output tile, double-buffered, f32
        b += 4 * 128 * max(CP, KP) * 4             # epilogue intermediates headroom
        return b

    if N < 128:
        tm = N                                     # full-extent batch block, no padding
    else:
        tm = 128
        for cand in (512, 256):
            if N >= 2 * cand and vmem_bytes(cand, 2) <= _VMEM_BUDGET:
                tm = cand
                break
    # v7x has 2 TensorCores: give the "parallel" batch axis >= 2 steps whenever
    # there is enough work to split (irrelevant for the tiny demo batch).
    if pl.cdiv(N, tm) == 1 and N >= 16:
        tm = _round_up(pl.cdiv(N, 2), 8)
    return tm, vmem_bytes(tm, 2)


def net_forward(x_nchw, w_conv, b_conv, w_fc, b_fc):
    """x_nchw: (N, C, H, W); w_conv: (C_out, C, H, W); w_fc: (K, C_out)."""
    N, C, H, W = x_nchw.shape
    C_out = w_conv.shape[0]          # 100
    K = w_fc.shape[0]                # num classes

    CHW = C * H * W
    CP = _round_up(C_out, _LANE)     # 100 -> 128 (lane-dense intermediate)
    KP = _round_up(K, _LANE)         # 10  -> 128 (lane-dense output stores)

    TM, vmem_est = _pick_batch_tile(N, CHW, CP, KP)
    grid = (pl.cdiv(N, TM),)

    # ---- packing -------------------------------------------------------------
    # Activations: reshape + bf16 cast only, NO pad (the pad was a full extra
    # read+write of the tensor in HBM).  Partial batch tiles are handled by the
    # Pallas pipeline (out-of-bounds rows are never written back).
    x_flat = x_nchw.reshape(N, CHW).astype(jnp.bfloat16)

    # Weights / biases: tiny, zero-pad to lane multiples, no transposes.
    wc = jnp.pad(w_conv.reshape(C_out, CHW),
                 ((0, CP - C_out), (0, 0))).astype(jnp.bfloat16)        # (CP, CHW)
    bc = jnp.pad(b_conv.reshape(1, C_out), ((0, 0), (0, CP - C_out)))   # (1, CP) f32
    # Padded contraction columns (C_out..CP) of wf MUST be zero so the 0.5 pad
    # activations do not leak into the fc output; jnp.pad gives zeros.
    wf = jnp.pad(w_fc, ((0, KP - K), (0, CP - C_out))).astype(jnp.bfloat16)  # (KP, CP)
    bf = jnp.pad(b_fc.reshape(1, K), ((0, 0), (0, KP - K)))                  # (1, KP) f32

    cost = pl.CostEstimate(
        flops=2 * N * (CHW * CP + CP * KP),
        transcendentals=N * CP,
        bytes_accessed=(2 * (N * CHW + CP * CHW + KP * CP)
                        + 4 * (CP + KP + N * KP)),
    )
    compiler_params = pltpu.CompilerParams(
        dimension_semantics=("parallel",),
        vmem_limit_bytes=int(min(max(2 * vmem_est, 32 << 20), 48 << 20)),
    )

    def run(single_buffer_weights):
        if single_buffer_weights:
            # Weight / bias blocks are grid-invariant: one pipeline buffer is
            # enough and halves their VMEM footprint.
            def wspec(shape):
                return pl.BlockSpec(shape, lambda i: (0, 0),
                                    pipeline_mode=pl.Buffered(1))
        else:
            def wspec(shape):
                return pl.BlockSpec(shape, lambda i: (0, 0))

        return pl.pallas_call(
            net_kernel,
            out_shape=jax.ShapeDtypeStruct((N, KP), jnp.float32),
            grid=grid,
            in_specs=[
                pl.BlockSpec((TM, CHW), lambda i: (i, 0)),   # batch tile per step
                wspec((CP, CHW)),                            # conv weight (resident)
                wspec((1, CP)),                              # conv bias
                wspec((KP, CP)),                             # fc weight
                wspec((1, KP)),                              # fc bias
            ],
            out_specs=pl.BlockSpec((TM, KP), lambda i: (i, 0)),
            compiler_params=compiler_params,
            cost_estimate=cost,
        )(x_flat, wc, bc, wf, bf)

    try:
        out_p = run(single_buffer_weights=True)
    except Exception:
        # Installed Pallas may not accept Buffered(1); default double-buffering
        # is only a VMEM-footprint difference, never a correctness one.
        out_p = run(single_buffer_weights=False)

    # Slice padded class columns back off.
    return out_p[:, :K]


def reference_forward(x_nchw, w_conv, b_conv, w_fc, b_fc,
                      compute_dtype=jnp.float32):
    """Pure-JAX reference (conv with full-extent kernel == matmul)."""
    N = x_nchw.shape[0]
    C_out = w_conv.shape[0]
    xq = x_nchw.reshape(N, -1).astype(compute_dtype)
    wcq = w_conv.reshape(C_out, -1).astype(compute_dtype)
    y = jnp.dot(xq, wcq.T, preferred_element_type=jnp.float32) + b_conv
    a = jax.nn.sigmoid(y) + jnp.maximum(y, 0.0)
    return (jnp.dot(a.astype(compute_dtype), w_fc.astype(compute_dtype).T,
                    preferred_element_type=jnp.float32) + b_fc)


if __name__ == "__main__":
    # Small shapes consistent with the module: conv1(C_in=4 -> 100, k=16x16),
    # fc1(100 -> 10), input batch=2, channels=4, spatial=16.
    N, C, H, W = 2, 4, 16, 16
    C_OUT, NUM_CLASSES = 100, 10

    key = jax.random.PRNGKey(0)
    k_x, k_wc, k_bc, k_wf, k_bf = jax.random.split(key, 5)

    x = jax.random.normal(k_x, (N, C, H, W), dtype=jnp.float32)

    # PyTorch-default-style uniform(-1/sqrt(fan_in), 1/sqrt(fan_in)) init.
    fan_conv = C * H * W
    bound_c = 1.0 / (fan_conv ** 0.5)
    w_conv = jax.random.uniform(k_wc, (C_OUT, C, H, W), jnp.float32, -bound_c, bound_c)
    b_conv = jax.random.uniform(k_bc, (C_OUT,), jnp.float32, -bound_c, bound_c)

    bound_f = 1.0 / (C_OUT ** 0.5)
    w_fc = jax.random.uniform(k_wf, (NUM_CLASSES, C_OUT), jnp.float32, -bound_f, bound_f)
    b_fc = jax.random.uniform(k_bf, (NUM_CLASSES,), jnp.float32, -bound_f, bound_f)

    out = net_forward(x, w_conv, b_conv, w_fc, b_fc)
    jax.block_until_ready(out)
    assert out.shape == (N, NUM_CLASSES)

    # Same math with the same bf16 input quantization -> tight tolerance.
    ref_bf16 = reference_forward(x, w_conv, b_conv, w_fc, b_fc, jnp.bfloat16)
    assert jnp.allclose(out, ref_bf16, atol=5e-3, rtol=5e-3), "mismatch vs bf16 reference"

    # Full-precision reference -> tolerance relaxed for bf16 MXU inputs
    # (f32 accumulation is kept, only input mantissas are truncated).
    ref_f32 = reference_forward(x, w_conv, b_conv, w_fc, b_fc, jnp.float32)
    assert jnp.allclose(out, ref_f32, atol=5e-2, rtol=5e-2), "mismatch vs f32 reference"

    print("KERNEL_OK")
</pallas_src>

<mosaic_0001>
module attributes {stable_mosaic.version = 11 : i64} {
  func.func @net_kernel(%arg0: i32, %arg1: memref<2x1024xbf16, #tpu.memory_space<vmem>>, %arg2: memref<128x1024xbf16, #tpu.memory_space<vmem>>, %arg3: memref<1x128xf32, #tpu.memory_space<vmem>>, %arg4: memref<128x128xbf16, #tpu.memory_space<vmem>>, %arg5: memref<1x128xf32, #tpu.memory_space<vmem>>, %arg6: memref<2x128xf32, #tpu.memory_space<vmem>>) attributes {dimension_semantics = [#tpu.dimension_semantics<parallel>], iteration_bounds = array<i64: 1>, scalar_prefetch = 0 : i64, scratch_operands = 0 : i64, tpu.core_type = #tpu.core_type<tc>, window_params = [{transform_indices = @transform_0, window_bounds = array<i64: 2, 1024>}, {pipeline_mode = #tpu.pipeline_mode<synchronous>, transform_indices = @transform_1, window_bounds = array<i64: 128, 1024>}, {pipeline_mode = #tpu.pipeline_mode<synchronous>, transform_indices = @transform_2, window_bounds = array<i64: 1, 128>}, {pipeline_mode = #tpu.pipeline_mode<synchronous>, transform_indices = @transform_3, window_bounds = array<i64: 128, 128>}, {pipeline_mode = #tpu.pipeline_mode<synchronous>, transform_indices = @transform_4, window_bounds = array<i64: 1, 128>}, {transform_indices = @transform_5, window_bounds = array<i64: 2, 128>}]} {
    %c0 = arith.constant 0 : index
    %c0_0 = arith.constant 0 : index
    %0 = vector.load %arg1[%c0, %c0_0] : memref<2x1024xbf16, #tpu.memory_space<vmem>>, vector<2x1024xbf16>
    %c0_1 = arith.constant 0 : index
    %c0_2 = arith.constant 0 : index
    %1 = vector.load %arg2[%c0_1, %c0_2] : memref<128x1024xbf16, #tpu.memory_space<vmem>>, vector<128x1024xbf16>
    %cst = arith.constant dense<0.000000e+00> : vector<2x128xf32>
    %2 = tpu.matmul %0, %1, %cst {dimension_numbers = #tpu.dot_dimension_numbers<[1], [1], [0], [0], [0, 0, 1, 0], [], []>} : vector<2x1024xbf16>, vector<128x1024xbf16>, vector<2x128xf32> -> vector<2x128xf32>
    %c0_3 = arith.constant 0 : index
    %c0_4 = arith.constant 0 : index
    %3 = vector.load %arg3[%c0_3, %c0_4] : memref<1x128xf32, #tpu.memory_space<vmem>>, vector<1x128xf32>
    %4 = vector.broadcast %3 : vector<1x128xf32> to vector<2x128xf32>
    %5 = arith.addf %2, %4 : vector<2x128xf32>
    %6 = arith.negf %5 : vector<2x128xf32>
    %7 = math.exp %6 : vector<2x128xf32>
    %cst_5 = arith.constant 1.000000e+00 : f32
    %8 = vector.broadcast %cst_5 : f32 to vector<2x128xf32>
    %9 = arith.addf %8, %7 : vector<2x128xf32>
    %10 = arith.divf %8, %9 : vector<2x128xf32>
    %cst_6 = arith.constant 0.000000e+00 : f32
    %11 = vector.broadcast %cst_6 : f32 to vector<2x128xf32>
    %12 = arith.maximumf %5, %11 : vector<2x128xf32>
    %13 = arith.addf %10, %12 : vector<2x128xf32>
    %14 = arith.truncf %13 : vector<2x128xf32> to vector<2x128xbf16>
    %c0_7 = arith.constant 0 : index
    %c0_8 = arith.constant 0 : index
    %15 = vector.load %arg4[%c0_7, %c0_8] : memref<128x128xbf16, #tpu.memory_space<vmem>>, vector<128x128xbf16>
    %cst_9 = arith.constant dense<0.000000e+00> : vector<2x128xf32>
    %16 = tpu.matmul %14, %15, %cst_9 {dimension_numbers = #tpu.dot_dimension_numbers<[1], [1], [0], [0], [0, 0, 1, 0], [], []>} : vector<2x128xbf16>, vector<128x128xbf16>, vector<2x128xf32> -> vector<2x128xf32>
    %c0_10 = arith.constant 0 : index
    %c0_11 = arith.constant 0 : index
    %17 = vector.load %arg5[%c0_10, %c0_11] : memref<1x128xf32, #tpu.memory_space<vmem>>, vector<1x128xf32>
    %18 = vector.broadcast %17 : vector<1x128xf32> to vector<2x128xf32>
    %19 = arith.addf %16, %18 : vector<2x128xf32>
    %c0_12 = arith.constant 0 : index
    %c0_13 = arith.constant 0 : index
    %20 = vector.load %arg6[%c0_12, %c0_13] : memref<2x128xf32, #tpu.memory_space<vmem>>, vector<2x128xf32>
    tpu.vector_store %arg6[%c0_12, %c0_13], %19 {strides = array<i32>} : memref<2x128xf32, #tpu.memory_space<vmem>>, vector<2x128xf32>,
    return
  }
  func.func @transform_0(%arg0: i32) -> (i32, i32) {
    %c0_i32 = arith.constant 0 : i32
    %c0_i32_0 = arith.constant 0 : i32
    return %arg0, %c0_i32 : i32, i32
  }
  func.func @transform_1(%arg0: i32) -> (i32, i32) {
    %c0_i32 = arith.constant 0 : i32
    %c0_i32_0 = arith.constant 0 : i32
    %c0_i32_1 = arith.constant 0 : i32
    return %c0_i32, %c0_i32_0 : i32, i32
  }
  func.func @transform_2(%arg0: i32) -> (i32, i32) {
    %c0_i32 = arith.constant 0 : i32
    %c0_i32_0 = arith.constant 0 : i32
    %c0_i32_1 = arith.constant 0 : i32
    return %c0_i32, %c0_i32_0 : i32, i32
  }
  func.func @transform_3(%arg0: i32) -> (i32, i32) {
    %c0_i32 = arith.constant 0 : i32
    %c0_i32_0 = arith.constant 0 : i32
    %c0_i32_1 = arith.constant 0 : i32
    return %c0_i32, %c0_i32_0 : i32, i32
  }
  func.func @transform_4(%arg0: i32) -> (i32, i32) {
    %c0_i32 = arith.constant 0 : i32
    %c0_i32_0 = arith.constant 0 : i32
    %c0_i32_1 = arith.constant 0 : i32
    return %c0_i32, %c0_i32_0 : i32, i32
  }
  func.func @transform_5(%arg0: i32) -> (i32, i32) {
    %c0_i32 = arith.constant 0 : i32
    %c0_i32_0 = arith.constant 0 : i32
    return %arg0, %c0_i32 : i32, i32
  }
}

module attributes {stable_mosaic.version = 11 : i64} {
  func.func @net_kernel(%arg0: i32, %arg1: memref<2x1024xbf16, #tpu.memory_space<vmem>>, %arg2: memref<128x1024xbf16, #tpu.memory_space<vmem>>, %arg3: memref<1x128xf32, #tpu.memory_space<vmem>>, %arg4: memref<128x128xbf16, #tpu.memory_space<vmem>>, %arg5: memref<1x128xf32, #tpu.memory_space<vmem>>, %arg6: memref<2x128xf32, #tpu.memory_space<vmem>>) attributes {dimension_semantics = [#tpu.dimension_semantics<parallel>], iteration_bounds = array<i64: 1>, scalar_prefetch = 0 : i64, scratch_operands = 0 : i64, tpu.core_type = #tpu.core_type<tc>, window_params = [{transform_indices = @transform_0, window_bounds = array<i64: 2, 1024>}, {pipeline_mode = #tpu.pipeline_mode<synchronous>, transform_indices = @transform_1, window_bounds = array<i64: 128, 1024>}, {pipeline_mode = #tpu.pipeline_mode<synchronous>, transform_indices = @transform_2, window_bounds = array<i64: 1, 128>}, {pipeline_mode = #tpu.pipeline_mode<synchronous>, transform_indices = @transform_3, window_bounds = array<i64: 128, 128>}, {pipeline_mode = #tpu.pipeline_mode<synchronous>, transform_indices = @transform_4, window_bounds = array<i64: 1, 128>}, {transform_indices = @transform_5, window_bounds = array<i64: 2, 128>}]} {
    %c0 = arith.constant 0 : index
    %c0_0 = arith.constant 0 : index
    %0 = vector.load %arg1[%c0, %c0_0] : memref<2x1024xbf16, #tpu.memory_space<vmem>>, vector<2x1024xbf16>
    %c0_1 = arith.constant 0 : index
    %c0_2 = arith.constant 0 : index
    %1 = vector.load %arg2[%c0_1, %c0_2] : memref<128x1024xbf16, #tpu.memory_space<vmem>>, vector<128x1024xbf16>
    %cst = arith.constant dense<0.000000e+00> : vector<2x128xf32>
    %2 = tpu.matmul %0, %1, %cst {dimension_numbers = #tpu.dot_dimension_numbers<[1], [1], [0], [0], [0, 0, 1, 0], [], []>} : vector<2x1024xbf16>, vector<128x1024xbf16>, vector<2x128xf32> -> vector<2x128xf32>
    %c0_3 = arith.constant 0 : index
    %c0_4 = arith.constant 0 : index
    %3 = vector.load %arg3[%c0_3, %c0_4] : memref<1x128xf32, #tpu.memory_space<vmem>>, vector<1x128xf32>
    %4 = vector.broadcast %3 : vector<1x128xf32> to vector<2x128xf32>
    %5 = arith.addf %2, %4 : vector<2x128xf32>
    %6 = arith.negf %5 : vector<2x128xf32>
    %7 = math.exp %6 : vector<2x128xf32>
    %cst_5 = arith.constant 1.000000e+00 : f32
    %8 = vector.broadcast %cst_5 : f32 to vector<2x128xf32>
    %9 = arith.addf %8, %7 : vector<2x128xf32>
    %10 = arith.divf %8, %9 : vector<2x128xf32>
    %cst_6 = arith.constant 0.000000e+00 : f32
    %11 = vector.broadcast %cst_6 : f32 to vector<2x128xf32>
    %12 = arith.maximumf %5, %11 : vector<2x128xf32>
    %13 = arith.addf %10, %12 : vector<2x128xf32>
    %14 = arith.truncf %13 : vector<2x128xf32> to vector<2x128xbf16>
    %c0_7 = arith.constant 0 : index
    %c0_8 = arith.constant 0 : index
    %15 = vector.load %arg4[%c0_7, %c0_8] : memref<128x128xbf16, #tpu.memory_space<vmem>>, vector<128x128xbf16>
    %cst_9 = arith.constant dense<0.000000e+00> : vector<2x128xf32>
    %16 = tpu.matmul %14, %15, %cst_9 {dimension_numbers = #tpu.dot_dimension_numbers<[1], [1], [0], [0], [0, 0, 1, 0], [], []>} : vector<2x128xbf16>, vector<128x128xbf16>, vector<2x128xf32> -> vector<2x128xf32>
    %c0_10 = arith.constant 0 : index
    %c0_11 = arith.constant 0 : index
    %17 = vector.load %arg5[%c0_10, %c0_11] : memref<1x128xf32, #tpu.memory_space<vmem>>, vector<1x128xf32>
    %18 = vector.broadcast %17 : vector<1x128xf32> to vector<2x128xf32>
    %19 = arith.addf %16, %18 : vector<2x128xf32>
    %c0_12 = arith.constant 0 : index
    %c0_13 = arith.constant 0 : index
    %20 = vector.load %arg6[%c0_12, %c0_13] : memref<2x128xf32, #tpu.memory_space<vmem>>, vector<2x128xf32>
    tpu.vector_store %arg6[%c0_12, %c0_13], %19 {strides = array<i32>} : memref<2x128xf32, #tpu.memory_space<vmem>>, vector<2x128xf32>,
    return
  }
  func.func @transform_0(%arg0: i32) -> (i32, i32) {
    %c0_i32 = arith.constant 0 : i32
    %c0_i32_0 = arith.constant 0 : i32
    return %arg0, %c0_i32 : i32, i32
  }
  func.func @transform_1(%arg0: i32) -> (i32, i32) {
    %c0_i32 = arith.constant 0 : i32
    %c0_i32_0 = arith.constant 0 : i32
    %c0_i32_1 = arith.constant 0 : i32
    return %c0_i32, %c0_i32_0 : i32, i32
  }
  func.func @transform_2(%arg0: i32) -> (i32, i32) {
    %c0_i32 = arith.constant 0 : i32
    %c0_i32_0 = arith.constant 0 : i32
    %c0_i32_1 = arith.constant 0 : i32
    return %c0_i32, %c0_i32_0 : i32, i32
  }
  func.func @transform_3(%arg0: i32) -> (i32, i32) {
    %c0_i32 = arith.constant 0 : i32
    %c0_i32_0 = arith.constant 0 : i32
    %c0_i32_1 = arith.constant 0 : i32
    return %c0_i32, %c0_i32_0 : i32, i32
  }
  func.func @transform_4(%arg0: i32) -> (i32, i32) {
    %c0_i32 = arith.constant 0 : i32
    %c0_i32_0 = arith.constant 0 : i32
    %c0_i32_1 = arith.constant 0 : i32
    return %c0_i32, %c0_i32_0 : i32, i32
  }
  func.func @transform_5(%arg0: i32) -> (i32, i32) {
    %c0_i32 = arith.constant 0 : i32
    %c0_i32_0 = arith.constant 0 : i32
    return %arg0, %c0_i32 : i32, i32
  }
}

</mosaic_0001>

<llo_original>
// kernel: tpu_custom_call.1
$region0: #{tpu_custom_call.1}
  #allocation0 [shape = 'u32[]', space=smem, size = 0x4, offset = 0x4, fixed_abs, tag = 'smem constant byte address 0x4 - core index']
  #allocation1 [shape = 'u32[144,128]{1,0:T(1,128)}', space=vmem, size = 0x12000, scoped, tag = 'internal scratch']
  %s0 = inlined_call_operand.hbm [shape: bf16[2,1024], index: 0, kind: input, shape index: {}]
  %s1 = inlined_call_operand.hbm [shape: bf16[128,1024], index: 1, kind: input, shape index: {}]
  %s2 = inlined_call_operand.vmem [shape: f32[1,128], index: 2, kind: input, shape index: {}]
  %s3 = inlined_call_operand.hbm [shape: bf16[128,128], index: 3, kind: input, shape index: {}]
  %s4 = inlined_call_operand.vmem [shape: f32[1,128], index: 4, kind: input, shape index: {}]
  %s5 = inlined_call_operand.hbm [shape: f32[2,128], index: 5, kind: output, shape index: {}]
  %s6 = sld [smem:[#allocation0]]
  $region42: #{tpu_custom_call.1} parent=0
    _
  %s8 = ssub.s32 1, %s6
  %s9 = scalar_select 0, %s8, %s6
  $region1: #{tpu_custom_call.1} parent=0
    #allocation2 [shape = 'u8[4096]{0}', space=vmem, size = 0x1000, scoped, tag = 'input window, operand 0, single buffered']
    #allocation3 [shape = 's32[1]{0}', space=sflag, size = 0x4, scoped, tag = 'scoped memory for tpu_custom_call.1']
    #allocation4 [shape = 's32[1]{0}', space=sflag, size = 0x4, scoped, tag = 'scoped memory for tpu_custom_call.1']
    #allocation5 [shape = 'u8[262144]{0}', space=vmem, size = 0x40000, scoped, tag = 'input window, operand 1, single buffered']
    #allocation6 [shape = 's32[1]{0}', space=sflag, size = 0x4, scoped, tag = 'scoped memory for tpu_custom_call.1']
    #allocation7 [shape = 'u8[32768]{0}', space=vmem, size = 0x8000, scoped, tag = 'input window, operand 3, single buffered']
    #allocation8 [shape = 'u8[1024]{0}', space=vmem, size = 0x400, scoped, tag = 'output window, operand 0, single buffered']
    %10 = vsyncpa [#allocation3], 0
    %11 = vsyncpa [#allocation6], 0
    %12 = vsyncpa [#allocation4], 0
    // Predicated region
    $region2: #{tpu_custom_call.1} parent=1 // pred_check
      _
    $region3: #{tpu_custom_call.1} parent=1 // pred_check_branch
      %14 = sbr.rel (0) target = $region5
    $region4: #{tpu_custom_call.1} parent=1 // pred_region
      %s16 = ssub.s32 128, 128
      %17 = vsyncadd [#allocation3], %s16
      %s19 = sshll.u32 [#allocation2], 4
      %s20 = int_to_ptr.vmem [resolvable:$true] %s19
      %22 = dma.hbm_to_vmem [thread:$0]  %s0, 128, %s20, [#allocation3]
    $region5: #{tpu_custom_call.1} parent=1 // pred_fallthru
      _
    // Predicated region
    $region6: #{tpu_custom_call.1} parent=1 // pred_check
      _
    $region7: #{tpu_custom_call.1} parent=1 // pred_check_branch
      %24 = sbr.rel (0) target = $region9
    $region8: #{tpu_custom_call.1} parent=1 // pred_region
      %s26 = ssub.s32 8192, 8192
      %27 = vsyncadd [#allocation6], %s26
      %s28 = sshll.u32 [#allocation5], 4
      %s29 = int_to_ptr.vmem [resolvable:$true] %s28
      %34 = dma.hbm_to_vmem [thread:$0]  %s1, 8192, %s29, [#allocation6], 512, 512, 32
    $region9: #{tpu_custom_call.1} parent=1 // pred_fallthru
      _
    // Predicated region
    $region10: #{tpu_custom_call.1} parent=1 // pred_check
      _
    $region11: #{tpu_custom_call.1} parent=1 // pred_check_branch
      %36 = sbr.rel (0) target = $region13
    $region12: #{tpu_custom_call.1} parent=1 // pred_region
      _
    $region13: #{tpu_custom_call.1} parent=1 // pred_fallthru
      _
    // Predicated region
    $region14: #{tpu_custom_call.1} parent=1 // pred_check
      _
    $region15: #{tpu_custom_call.1} parent=1 // pred_check_branch
      %38 = sbr.rel (0) target = $region17
    $region16: #{tpu_custom_call.1} parent=1 // pred_region
      %s40 = ssub.s32 1024, 1024
      %41 = vsyncadd [#allocation6], %s40
      %s42 = sshll.u32 [#allocation7], 4
      %s43 = int_to_ptr.vmem [resolvable:$true] %s42
      %48 = dma.hbm_to_vmem [thread:$0]  %s3, 1024, %s43, [#allocation6], 64, 64, 4
    $region17: #{tpu_custom_call.1} parent=1 // pred_fallthru
      _
    // Predicated region
    $region18: #{tpu_custom_call.1} parent=1 // pred_check
      _
    $region19: #{tpu_custom_call.1} parent=1 // pred_check_branch
      %50 = sbr.rel (0) target = $region21
    $region20: #{tpu_custom_call.1} parent=1 // pred_region
      _
    $region21: #{tpu_custom_call.1} parent=1 // pred_fallthru
      _
    // Predicated region
    $region22: #{tpu_custom_call.1} parent=1 // pred_check
      _
    $region23: #{tpu_custom_call.1} parent=1 // pred_check_branch
      %52 = sbr.rel (0) target = $region25
    $region24: #{tpu_custom_call.1} parent=1 // pred_region
      %53 = dma.done [#allocation3], 128
    $region25: #{tpu_custom_call.1} parent=1 // pred_fallthru
      _
    // Predicated region
    $region26: #{tpu_custom_call.1} parent=1 // pred_check
      _
    $region27: #{tpu_custom_call.1} parent=1 // pred_check_branch
      %55 = sbr.rel (0) target = $region29
    $region28: #{tpu_custom_call.1} parent=1 // pred_region
      %56 = dma.done [#allocation6], 8192
    $region29: #{tpu_custom_call.1} parent=1 // pred_fallthru
      _
    // Predicated region
    $region30: #{tpu_custom_call.1} parent=1 // pred_check
      _
    $region31: #{tpu_custom_call.1} parent=1 // pred_check_branch
      %58 = sbr.rel (0) target = $region33
    $region32: #{tpu_custom_call.1} parent=1 // pred_region
      %59 = dma.done [#allocation6], 1024
    $region33: #{tpu_custom_call.1} parent=1 // pred_fallthru
      _
    %v61 = vld [vmem:[#allocation2] sm:$0xff]
    %v62 = vld [vmem:[#allocation5] sm:$0xff]
    %v63 = vld [vmem:[#allocation5 + $0x8] sm:$0xff]
    %v64 = vld [vmem:[#allocation5 + $0x10] sm:$0xff]
    %v65 = vld [vmem:[#allocation5 + $0x18] sm:$0xff]
    %v66 = vld [vmem:[#allocation5 + $0x20] sm:$0xff]
    %v67 = vld [vmem:[#allocation5 + $0x28] sm:$0xff]
    %v68 = vld [vmem:[#allocation5 + $0x30] sm:$0xff]
    %v69 = vld [vmem:[#allocation5 + $0x38] sm:$0xff]
    %v70 = vld [vmem:[#allocation5 + $0x40] sm:$0xff]
    %v71 = vld [vmem:[#allocation5 + $0x48] sm:$0xff]
    %v72 = vld [vmem:[#allocation5 + $0x50] sm:$0xff]
    %v73 = vld [vmem:[#allocation5 + $0x58] sm:$0xff]
    %v74 = vld [vmem:[#allocation5 + $0x60] sm:$0xff]
    %v75 = vld [vmem:[#allocation5 + $0x68] sm:$0xff]
    %v76 = vld [vmem:[#allocation5 + $0x70] sm:$0xff]
    %v77 = vld [vmem:[#allocation5 + $0x78] sm:$0xff]
    %v78 = vld [vmem:[#allocation5 + $0x80] sm:$0xff]
    %v79 = vld [vmem:[#allocation5 + $0x88] sm:$0xff]
    %v80 = vld [vmem:[#allocation5 + $0x90] sm:$0xff]
    %v81 = vld [vmem:[#allocation5 + $0x98] sm:$0xff]
    %v82 = vld [vmem:[#allocation5 + $0xa0] sm:$0xff]
    %v83 = vld [vmem:[#allocation5 + $0xa8] sm:$0xff]
    %v84 = vld [vmem:[#allocation5 + $0xb0] sm:$0xff]
    %v85 = vld [vmem:[#allocation5 + $0xb8] sm:$0xff]
    %v86 = vld [vmem:[#allocation5 + $0xc0] sm:$0xff]
    %v87 = vld [vmem:[#allocation5 + $0xc8] sm:$0xff]
    %v88 = vld [vmem:[#allocation5 + $0xd0] sm:$0xff]
    %v89 = vld [vmem:[#allocation5 + $0xd8] sm:$0xff]
    %v90 = vld [vmem:[#allocation5 + $0xe0] sm:$0xff]
    %v91 = vld [vmem:[#allocation5 + $0xe8] sm:$0xff]
    %v92 = vld [vmem:[#allocation5 + $0xf0] sm:$0xff]
    %v93 = vld [vmem:[#allocation5 + $0xf8] sm:$0xff]
    %v94 = vld [vmem:[#allocation5 + $0x100] sm:$0xff]
    %v95 = vld [vmem:[#allocation5 + $0x108] sm:$0xff]
    %v96 = vld [vmem:[#allocation5 + $0x110] sm:$0xff]
    %v97 = vld [vmem:[#allocation5 + $0x118] sm:$0xff]
    %v98 = vld [vmem:[#allocation5 + $0x120] sm:$0xff]
    %v99 = vld [vmem:[#allocation5 + $0x128] sm:$0xff]
    %v100 = vld [vmem:[#allocation5 + $0x130] sm:$0xff]
    %v101 = vld [vmem:[#allocation5 + $0x138] sm:$0xff]
    %v102 = vld [vmem:[#allocation5 + $0x140] sm:$0xff]
    %v103 = vld [vmem:[#allocation5 + $0x148] sm:$0xff]
    %v104 = vld [vmem:[#allocation5 + $0x150] sm:$0xff]
    %v105 = vld [vmem:[#allocation5 + $0x158] sm:$0xff]
    %v106 = vld [vmem:[#allocation5 + $0x160] sm:$0xff]
    %v107 = vld [vmem:[#allocation5 + $0x168] sm:$0xff]
    %v108 = vld [vmem:[#allocation5 + $0x170] sm:$0xff]
    %v109 = vld [vmem:[#allocation5 + $0x178] sm:$0xff]
    %v110 = vld [vmem:[#allocation5 + $0x180] sm:$0xff]
    %v111 = vld [vmem:[#allocation5 + $0x188] sm:$0xff]
    %v112 = vld [vmem:[#allocation5 + $0x190] sm:$0xff]
    %v113 = vld [vmem:[#allocation5 + $0x198] sm:$0xff]
    %v114 = vld [vmem:[#allocation5 + $0x1a0] sm:$0xff]
    %v115 = vld [vmem:[#allocation5 + $0x1a8] sm:$0xff]
    %v116 = vld [vmem:[#allocation5 + $0x1b0] sm:$0xff]
    %v117 = vld [vmem:[#allocation5 + $0x1b8] sm:$0xff]
    %v118 = vld [vmem:[#allocation5 + $0x1c0] sm:$0xff]
    %v119 = vld [vmem:[#allocation5 + $0x1c8] sm:$0xff]
    %v120 = vld [vmem:[#allocation5 + $0x1d0] sm:$0xff]
    %v121 = vld [vmem:[#allocation5 + $0x1d8] sm:$0xff]
    %v122 = vld [vmem:[#allocation5 + $0x1e0] sm:$0xff]
    %v123 = vld [vmem:[#allocation5 + $0x1e8] sm:$0xff]
    %v124 = vld [vmem:[#allocation5 + $0x1f0] sm:$0xff]
    %v125 = vld [vmem:[#allocation5 + $0x1f8] sm:$0xff]
    %v126 = vld [vmem:[%s2] sm:$0x1]
    %v128 = vlaneseq
    %v129 = vshrl.u32 %v128, 7
    %v130 = vsub.s32 0, %v129
    %v131 = vrot.slane %v126, %v130
    %v134 = vcombine.high %v61, %v61
    %v136 = vunpack.c.l.s4 1966171168
    %v137 = vunpack.c.0.s8 %v136
    %v138 = vlaneseq
    %v139 = vshrl.u32 %v138, 7
    %v140 = vsub.s32 %v137, %v139
    %v141 = vrot.slane %v61, %v140
    %v143 = vunpack.c.l.s4 1966171168
    %v144 = vunpack.c.0.s8 %v143
    %v145 = vlaneseq
    %v146 = vshrl.u32 %v145, 7
    %v147 = vsub.s32 %v144, %v146
    %v148 = vrot.slane %v134, %v147
    %v149 = vcombine.high %v141, %v141
    %v150 = vcombine.high %v148, %v148
    %v152 = vunpack.c.l.s4 1966171168
    %v153 = vunpack.c.0.s8 %v152
    %v154 = vlaneseq
    %v155 = vshrl.u32 %v154, 7
    %v156 = vsub.s32 %v153, %v155
    %v157 = vrot.slane %v141, %v156
    %v159 = vunpack.c.l.s4 1966171168
    %v160 = vunpack.c.0.s8 %v159
    %v161 = vlaneseq
    %v162 = vshrl.u32 %v161, 7
    %v163 = vsub.s32 %v160, %v162
    %v164 = vrot.slane %v148, %v163
    %v166 = vunpack.c.l.s4 1966171168
    %v167 = vunpack.c.0.s8 %v166
    %v168 = vlaneseq
    %v169 = vshrl.u32 %v168, 7
    %v170 = vsub.s32 %v167, %v169
    %v171 = vrot.slane %v149, %v170
    %v173 = vunpack.c.l.s4 1966171168
    %v174 = vunpack.c.0.s8 %v173
    %v175 = vlaneseq
    %v176 = vshrl.u32 %v175, 7
    %v177 = vsub.s32 %v174, %v176
    %v178 = vrot.slane %v150, %v177
    %v179 = vcombine.high %v157, %v157
    %v180 = vcombine.high %v164, %v164
    %v181 = vcombine.high %v171, %v171
    %v182 = vcombine.high %v178, %v178
    %v255 = vunpack.c.l.b16 %v62
    %v256 = vunpack.c.h.b16 %v62
    %v257 = vunpack.c.l.b16 %v63
    %v258 = vunpack.c.h.b16 %v63
    %v259 = vunpack.c.l.b16 %v64
    %v260 = vunpack.c.h.b16 %v64
    %v261 = vunpack.c.l.b16 %v65
    %v262 = vunpack.c.h.b16 %v65
    %v263 = vunpack.c.l.b16 %v66
    %v264 = vunpack.c.h.b16 %v66
    %v265 = vunpack.c.l.b16 %v67
    %v266 = vunpack.c.h.b16 %v67
    %v267 = vunpack.c.l.b16 %v68
    %v268 = vunpack.c.h.b16 %v68
    %v269 = vunpack.c.l.b16 %v69
    %v270 = vunpack.c.h.b16 %v69
    %v271 = vunpack.c.l.b16 %v70
    %v272 = vunpack.c.h.b16 %v70
    %v273 = vunpack.c.l.b16 %v71
    %v274 = vunpack.c.h.b16 %v71
    %v275 = vunpack.c.l.b16 %v72
    %v276 = vunpack.c.h.b16 %v72
    %v277 = vunpack.c.l.b16 %v73
    %v278 = vunpack.c.h.b16 %v73
    %v279 = vunpack.c.l.b16 %v74
    %v280 = vunpack.c.h.b16 %v74
    %v281 = vunpack.c.l.b16 %v75
    %v282 = vunpack.c.h.b16 %v75
    %v283 = vunpack.c.l.b16 %v76
    %v284 = vunpack.c.h.b16 %v76
    %v285 = vunpack.c.l.b16 %v77
    %v286 = vunpack.c.h.b16 %v77
    %v287 = vunpack.c.l.b16 %v78
    %v288 = vunpack.c.h.b16 %v78
    %v289 = vunpack.c.l.b16 %v79
    %v290 = vunpack.c.h.b16 %v79
    %v291 = vunpack.c.l.b16 %v80
    %v292 = vunpack.c.h.b16 %v80
    %v293 = vunpack.c.l.b16 %v81
    %v294 = vunpack.c.h.b16 %v81
    %v295 = vunpack.c.l.b16 %v82
    %v296 = vunpack.c.h.b16 %v82
    %v297 = vunpack.c.l.b16 %v83
    %v298 = vunpack.c.h.b16 %v83
    %v299 = vunpack.c.l.b16 %v84
    %v300 = vunpack.c.h.b16 %v84
    %v301 = vunpack.c.l.b16 %v85
    %v302 = vunpack.c.h.b16 %v85
    %v303 = vunpack.c.l.b16 %v86
    %v304 = vunpack.c.h.b16 %v86
    %v305 = vunpack.c.l.b16 %v87
    %v306 = vunpack.c.h.b16 %v87
    %v307 = vunpack.c.l.b16 %v88
    %v308 = vunpack.c.h.b16 %v88
    %v309 = vunpack.c.l.b16 %v89
    %v310 = vunpack.c.h.b16 %v89
    %v311 = vunpack.c.l.b16 %v90
    %v312 = vunpack.c.h.b16 %v90
    %v313 = vunpack.c.l.b16 %v91
    %v314 = vunpack.c.h.b16 %v91
    %v315 = vunpack.c.l.b16 %v92
    %v316 = vunpack.c.h.b16 %v92
    %v317 = vunpack.c.l.b16 %v93
    %v318 = vunpack.c.h.b16 %v93
    %v319 = vunpack.c.l.b16 %v94
    %v320 = vunpack.c.h.b16 %v94
    %v321 = vunpack.c.l.b16 %v95
    %v322 = vunpack.c.h.b16 %v95
    %v323 = vunpack.c.l.b16 %v96
    %v324 = vunpack.c.h.b16 %v96
    %v325 = vunpack.c.l.b16 %v97
    %v326 = vunpack.c.h.b16 %v97
    %v327 = vunpack.c.l.b16 %v98
    %v328 = vunpack.c.h.b16 %v98
    %v329 = vunpack.c.l.b16 %v99
    %v330 = vunpack.c.h.b16 %v99
    %v331 = vunpack.c.l.b16 %v100
    %v332 = vunpack.c.h.b16 %v100
    %v333 = vunpack.c.l.b16 %v101
    %v334 = vunpack.c.h.b16 %v101
    %v335 = vunpack.c.l.b16 %v102
    %v336 = vunpack.c.h.b16 %v102
    %v337 = vunpack.c.l.b16 %v103
    %v338 = vunpack.c.h.b16 %v103
    %v339 = vunpack.c.l.b16 %v104
    %v340 = vunpack.c.h.b16 %v104
    %v341 = vunpack.c.l.b16 %v105
    %v342 = vunpack.c.h.b16 %v105
    %v343 = vunpack.c.l.b16 %v106
    %v344 = vunpack.c.h.b16 %v106
    %v345 = vunpack.c.l.b16 %v107
    %v346 = vunpack.c.h.b16 %v107
    %v347 = vunpack.c.l.b16 %v108
    %v348 = vunpack.c.h.b16 %v108
    %v349 = vunpack.c.l.b16 %v109
    %v350 = vunpack.c.h.b16 %v109
    %v351 = vunpack.c.l.b16 %v110
    %v352 = vunpack.c.h.b16 %v110
    %v353 = vunpack.c.l.b16 %v111
    %v354 = vunpack.c.h.b16 %v111
    %v355 = vunpack.c.l.b16 %v112
    %v356 = vunpack.c.h.b16 %v112
    %v357 = vunpack.c.l.b16 %v113
    %v358 = vunpack.c.h.b16 %v113
    %v359 = vunpack.c.l.b16 %v114
    %v360 = vunpack.c.h.b16 %v114
    %v361 = vunpack.c.l.b16 %v115
    %v362 = vunpack.c.h.b16 %v115
    %v363 = vunpack.c.l.b16 %v116
    %v364 = vunpack.c.h.b16 %v116
    %v365 = vunpack.c.l.b16 %v117
    %v366 = vunpack.c.h.b16 %v117
    %v367 = vunpack.c.l.b16 %v118
    %v368 = vunpack.c.h.b16 %v118
    %v369 = vunpack.c.l.b16 %v119
    %v370 = vunpack.c.h.b16 %v119
    %v371 = vunpack.c.l.b16 %v120
    %v372 = vunpack.c.h.b16 %v120
    %v373 = vunpack.c.l.b16 %v121
    %v374 = vunpack.c.h.b16 %v121
    %v375 = vunpack.c.l.b16 %v122
    %v376 = vunpack.c.h.b16 %v122
    %v377 = vunpack.c.l.b16 %v123
    %v378 = vunpack.c.h.b16 %v123
    %v379 = vunpack.c.l.b16 %v124
    %v380 = vunpack.c.h.b16 %v124
    %v381 = vunpack.c.l.b16 %v125
    %v382 = vunpack.c.h.b16 %v125
    %v383 = vpack.c.b16 %v263, %v255
    %v384 = vpack.c.b16 %v264, %v256
    %v385 = vpack.c.b16 %v265, %v257
    %v386 = vpack.c.b16 %v266, %v258
    %v387 = vpack.c.b16 %v267, %v259
    %v388 = vpack.c.b16 %v268, %v260
    %v389 = vpack.c.b16 %v269, %v261
    %v390 = vpack.c.b16 %v270, %v262
    %v391 = vpack.c.b16 %v279, %v271
    %v392 = vpack.c.b16 %v280, %v272
    %v393 = vpack.c.b16 %v281, %v273
    %v394 = vpack.c.b16 %v282, %v274
    %v395 = vpack.c.b16 %v283, %v275
    %v396 = vpack.c.b16 %v284, %v276
    %v397 = vpack.c.b16 %v285, %v277
    %v398 = vpack.c.b16 %v286, %v278
    %v399 = vpack.c.b16 %v295, %v287
    %v400 = vpack.c.b16 %v296, %v288
    %v401 = vpack.c.b16 %v297, %v289
    %v402 = vpack.c.b16 %v298, %v290
    %v403 = vpack.c.b16 %v299, %v291
    %v404 = vpack.c.b16 %v300, %v292
    %v405 = vpack.c.b16 %v301, %v293
    %v406 = vpack.c.b16 %v302, %v294
    %v407 = vpack.c.b16 %v311, %v303
    %v408 = vpack.c.b16 %v312, %v304
    %v409 = vpack.c.b16 %v313, %v305
    %v410 = vpack.c.b16 %v314, %v306
    %v411 = vpack.c.b16 %v315, %v307
    %v412 = vpack.c.b16 %v316, %v308
    %v413 = vpack.c.b16 %v317, %v309
    %v414 = vpack.c.b16 %v318, %v310
    %v415 = vpack.c.b16 %v327, %v319
    %v416 = vpack.c.b16 %v328, %v320
    %v417 = vpack.c.b16 %v329, %v321
    %v418 = vpack.c.b16 %v330, %v322
    %v419 = vpack.c.b16 %v331, %v323
    %v420 = vpack.c.b16 %v332, %v324
    %v421 = vpack.c.b16 %v333, %v325
    %v422 = vpack.c.b16 %v334, %v326
    %v423 = vpack.c.b16 %v343, %v335
    %v424 = vpack.c.b16 %v344, %v336
    %v425 = vpack.c.b16 %v345, %v337
    %v426 = vpack.c.b16 %v346, %v338
    %v427 = vpack.c.b16 %v347, %v339
    %v428 = vpack.c.b16 %v348, %v340
    %v429 = vpack.c.b16 %v349, %v341
    %v430 = vpack.c.b16 %v350, %v342
    %v431 = vpack.c.b16 %v359, %v351
    %v432 = vpack.c.b16 %v360, %v352
    %v433 = vpack.c.b16 %v361, %v353
    %v434 = vpack.c.b16 %v362, %v354
    %v435 = vpack.c.b16 %v363, %v355
    %v436 = vpack.c.b16 %v364, %v356
    %v437 = vpack.c.b16 %v365, %v357
    %v438 = vpack.c.b16 %v366, %v358
    %v439 = vpack.c.b16 %v375, %v367
    %v440 = vpack.c.b16 %v376, %v368
    %v441 = vpack.c.b16 %v377, %v369
    %v442 = vpack.c.b16 %v378, %v370
    %v443 = vpack.c.b16 %v379, %v371
    %v444 = vpack.c.b16 %v380, %v372
    %v445 = vpack.c.b16 %v381, %v373
    %v446 = vpack.c.b16 %v382, %v374
    %511 = vmatprep.subr.bf16.mxu0 %v440
    %512 = vmatpush1.bf16.xpose.msra.mxu0 %v439
    %513 = vmatprep.subr.bf16.mxu0 %v432
    %514 = vmatpush1.bf16.xpose.msra.mxu0 %v431
    %515 = vmatprep.subr.bf16.mxu0 %v424
    %516 = vmatpush1.bf16.xpose.msra.mxu0 %v423
    %517 = vmatprep.subr.bf16.mxu0 %v416
    %518 = vmatpush1.bf16.xpose.msra.mxu0 %v415
    %519 = vmatprep.subr.bf16.mxu0 %v408
    %520 = vmatpush1.bf16.xpose.msra.mxu0 %v407
    %521 = vmatprep.subr.bf16.mxu0 %v400
    %522 = vmatpush1.bf16.xpose.msra.mxu0 %v399
    %523 = vmatprep.subr.bf16.mxu0 %v392
    %524 = vmatpush1.bf16.xpose.msra.mxu0 %v391
    %525 = vmatprep.subr.bf16.mxu0 %v384
    %526 = vmatpush1.bf16.xpose.msra.mxu0 %v383
    %527 = vmatprep.subr.bf16.mxu0 0
    %528 = vmatpush2.bf16.xpose.msra.mxu0 0
    %529 = vmatprep.subr.bf16.mxu0 0
    %530 = vmatpush2.bf16.xpose.msra.mxu0 0
    %531 = vmatprep.subr.bf16.mxu0 0
    %532 = vmatpush2.bf16.xpose.msra.mxu0 0
    %533 = vmatprep.subr.bf16.mxu0 0
    %534 = vmatpush2.bf16.xpose.msra.mxu0 0
    %535 = vmatprep.subr.bf16.mxu0 0
    %536 = vmatpush2.bf16.xpose.msra.mxu0 0
    %537 = vmatprep.subr.bf16.mxu0 0
    %538 = vmatpush2.bf16.xpose.msra.mxu0 0
    %539 = vmatprep.subr.bf16.mxu0 0
    %540 = vmatpush2.bf16.xpose.msra.mxu0 0
    %541 = vmatprep.subr.bf16.mxu0 0
    %542 = vmatpush2.bf16.xpose.msra.mxu0 0
    %543 = vmatprep.mubr.bf16.mxu0 %v171
    %544 = vmatmul.mubr.bf16.gmra.mxu0 %v157
    %v545 = vpop.f32.mrf.mxu0
    %v546 = vadd.f32 %v131, %v545
    %v547 = vpop.f32.mrf.mxu0
    %v548 = vpop.f32.mrf.mxu0
    %v549 = vpop.f32.mrf.mxu0
    %550 = vdwg.mxu0
    %551 = vmatprep.subr.bf16.mxu0 %v442
    %552 = vmatpush1.bf16.xpose.msra.mxu0 %v441
    %553 = vmatprep.subr.bf16.mxu0 %v434
    %554 = vmatpush1.bf16.xpose.msra.mxu0 %v433
    %555 = vmatprep.subr.bf16.mxu0 %v426
    %556 = vmatpush1.bf16.xpose.msra.mxu0 %v425
    %557 = vmatprep.subr.bf16.mxu0 %v418
    %558 = vmatpush1.bf16.xpose.msra.mxu0 %v417
    %559 = vmatprep.subr.bf16.mxu0 %v410
    %560 = vmatpush1.bf16.xpose.msra.mxu0 %v409
    %561 = vmatprep.subr.bf16.mxu0 %v402
    %562 = vmatpush1.bf16.xpose.msra.mxu0 %v401
    %563 = vmatprep.subr.bf16.mxu0 %v394
    %564 = vmatpush1.bf16.xpose.msra.mxu0 %v393
    %565 = vmatprep.subr.bf16.mxu0 %v386
    %566 = vmatpush1.bf16.xpose.msra.mxu0 %v385
    %567 = vmatprep.subr.bf16.mxu0 0
    %568 = vmatpush2.bf16.xpose.msra.mxu0 0
    %569 = vmatprep.subr.bf16.mxu0 0
    %570 = vmatpush2.bf16.xpose.msra.mxu0 0
    %571 = vmatprep.subr.bf16.mxu0 0
    %572 = vmatpush2.bf16.xpose.msra.mxu0 0
    %573 = vmatprep.subr.bf16.mxu0 0
    %574 = vmatpush2.bf16.xpose.msra.mxu0 0
    %575 = vmatprep.subr.bf16.mxu0 0
    %576 = vmatpush2.bf16.xpose.msra.mxu0 0
    %577 = vmatprep.subr.bf16.mxu0 0
    %578 = vmatpush2.bf16.xpose.msra.mxu0 0
    %579 = vmatprep.subr.bf16.mxu0 0
    %580 = vmatpush2.bf16.xpose.msra.mxu0 0
    %581 = vmatprep.subr.bf16.mxu0 0
    %582 = vmatpush2.bf16.xpose.msra.mxu0 0
    %583 = vmatprep.mubr.bf16.mxu0 %v181
    %584 = vmatmul.mubr.bf16.gmra.mxu0 %v179
    %v585 = vpop.f32.mrf.mxu0
    %v586 = vadd.f32 %v546, %v585
    %v587 = vpop.f32.mrf.mxu0
    %v588 = vpop.f32.mrf.mxu0
    %v589 = vpop.f32.mrf.mxu0
    %590 = vdwg.mxu0
    %591 = vmatprep.subr.bf16.mxu0 %v444
    %592 = vmatpush1.bf16.xpose.msra.mxu0 %v443
    %593 = vmatprep.subr.bf16.mxu0 %v436
    %594 = vmatpush1.bf16.xpose.msra.mxu0 %v435
    %595 = vmatprep.subr.bf16.mxu0 %v428
    %596 = vmatpush1.bf16.xpose.msra.mxu0 %v427
    %597 = vmatprep.subr.bf16.mxu0 %v420
    %598 = vmatpush1.bf16.xpose.msra.mxu0 %v419
    %599 = vmatprep.subr.bf16.mxu0 %v412
    %600 = vmatpush1.bf16.xpose.msra.mxu0 %v411
    %601 = vmatprep.subr.bf16.mxu0 %v404
    %602 = vmatpush1.bf16.xpose.msra.mxu0 %v403
    %603 = vmatprep.subr.bf16.mxu0 %v396
    %604 = vmatpush1.bf16.xpose.msra.mxu0 %v395
    %605 = vmatprep.subr.bf16.mxu0 %v388
    %606 = vmatpush1.bf16.xpose.msra.mxu0 %v387
    %607 = vmatprep.subr.bf16.mxu0 0
    %608 = vmatpush2.bf16.xpose.msra.mxu0 0
    %609 = vmatprep.subr.bf16.mxu0 0
    %610 = vmatpush2.bf16.xpose.msra.mxu0 0
    %611 = vmatprep.subr.bf16.mxu0 0
    %612 = vmatpush2.bf16.xpose.msra.mxu0 0
    %613 = vmatprep.subr.bf16.mxu0 0
    %614 = vmatpush2.bf16.xpose.msra.mxu0 0
    %615 = vmatprep.subr.bf16.mxu0 0
    %616 = vmatpush2.bf16.xpose.msra.mxu0 0
    %617 = vmatprep.subr.bf16.mxu0 0
    %618 = vmatpush2.bf16.xpose.msra.mxu0 0
    %619 = vmatprep.subr.bf16.mxu0 0
    %620 = vmatpush2.bf16.xpose.msra.mxu0 0
    %621 = vmatprep.subr.bf16.mxu0 0
    %622 = vmatpush2.bf16.xpose.msra.mxu0 0
    %623 = vmatprep.mubr.bf16.mxu0 %v178
    %624 = vmatmul.mubr.bf16.gmra.mxu0 %v164
    %v625 = vpop.f32.mrf.mxu0
    %v626 = vadd.f32 %v586, %v625
    %v627 = vpop.f32.mrf.mxu0
    %v628 = vpop.f32.mrf.mxu0
    %v629 = vpop.f32.mrf.mxu0
    %630 = vdwg.mxu0
    %631 = vmatprep.subr.bf16.mxu0 %v446
    %632 = vmatpush1.bf16.xpose.msra.mxu0 %v445
    %633 = vmatprep.subr.bf16.mxu0 %v438
    %634 = vmatpush1.bf16.xpose.msra.mxu0 %v437
    %635 = vmatprep.subr.bf16.mxu0 %v430
    %636 = vmatpush1.bf16.xpose.msra.mxu0 %v429
    %637 = vmatprep.subr.bf16.mxu0 %v422
    %638 = vmatpush1.bf16.xpose.msra.mxu0 %v421
    %639 = vmatprep.subr.bf16.mxu0 %v414
    %640 = vmatpush1.bf16.xpose.msra.mxu0 %v413
    %641 = vmatprep.subr.bf16.mxu0 %v406
    %642 = vmatpush1.bf16.xpose.msra.mxu0 %v405
    %643 = vmatprep.subr.bf16.mxu0 %v398
    %644 = vmatpush1.bf16.xpose.msra.mxu0 %v397
    %645 = vmatprep.subr.bf16.mxu0 %v390
    %646 = vmatpush1.bf16.xpose.msra.mxu0 %v389
    %647 = vmatprep.subr.bf16.mxu0 0
    %648 = vmatpush2.bf16.xpose.msra.mxu0 0
    %649 = vmatprep.subr.bf16.mxu0 0
    %650 = vmatpush2.bf16.xpose.msra.mxu0 0
    %651 = vmatprep.subr.bf16.mxu0 0
    %652 = vmatpush2.bf16.xpose.msra.mxu0 0
    %653 = vmatprep.subr.bf16.mxu0 0
    %654 = vmatpush2.bf16.xpose.msra.mxu0 0
    %655 = vmatprep.subr.bf16.mxu0 0
    %656 = vmatpush2.bf16.xpose.msra.mxu0 0
    %657 = vmatprep.subr.bf16.mxu0 0
    %658 = vmatpush2.bf16.xpose.msra.mxu0 0
    %659 = vmatprep.subr.bf16.mxu0 0
    %660 = vmatpush2.bf16.xpose.msra.mxu0 0
    %661 = vmatprep.subr.bf16.mxu0 0
    %662 = vmatpush2.bf16.xpose.msra.mxu0 0
    %663 = vmatprep.mubr.bf16.mxu0 %v182
    %664 = vmatmul.mubr.bf16.gmra.mxu0 %v180
    %v665 = vpop.f32.mrf.mxu0
    %v666 = vadd.f32 %v626, %v665
    %v667 = vpop.f32.mrf.mxu0
    %v668 = vpop.f32.mrf.mxu0
    %v669 = vpop.f32.mrf.mxu0
    %670 = vdwg.mxu0
    %v671 = vxor.u32 %v666, 2147483648
    %v672 = vmul.f32 %v671, 1.442695
    %v673 = vpow.pop %v672
    %v674 = vadd.f32 %v673, 1.0
    %v675 = vrcp.pop %v674
    %v676 = vmul.f32 1.0, %v675
    %v677 = vmax.f32 %v666, 0.0
    %v678 = vadd.f32 %v676, %v677
    %v679 = vpack.c.bf16 %v678, %v678
    %v680 = vld [vmem:[#allocation7] sm:$0xf]
    %v681 = vld [vmem:[#allocation7 + $0x4] sm:$0xf]
    %v682 = vld [vmem:[#allocation7 + $0x8] sm:$0xf]
    %v683 = vld [vmem:[#allocation7 + $0xc] sm:$0xf]
    %v684 = vld [vmem:[#allocation7 + $0x10] sm:$0xf]
    %v685 = vld [vmem:[#allocation7 + $0x14] sm:$0xf]
    %v686 = vld [vmem:[#allocation7 + $0x18] sm:$0xf]
    %v687 = vld [vmem:[#allocation7 + $0x1c] sm:$0xf]
    %v688 = vld [vmem:[#allocation7 + $0x20] sm:$0xf]
    %v689 = vld [vmem:[#allocation7 + $0x24] sm:$0xf]
    %v690 = vld [vmem:[#allocation7 + $0x28] sm:$0xf]
    %v691 = vld [vmem:[#allocation7 + $0x2c] sm:$0xf]
    %v692 = vld [vmem:[#allocation7 + $0x30] sm:$0xf]
    %v693 = vld [vmem:[#allocation7 + $0x34] sm:$0xf]
    %v694 = vld [vmem:[#allocation7 + $0x38] sm:$0xf]
    %v695 = vld [vmem:[#allocation7 + $0x3c] sm:$0xf]
    %v696 = vld [vmem:[%s4] sm:$0x1]
    %v698 = vlaneseq
    %v699 = vshrl.u32 %v698, 7
    %v700 = vsub.s32 0, %v699
    %v701 = vrot.slane %v696, %v700
    %v719 = vunpack.c.l.b16 %v680
    %v720 = vunpack.c.l.b16 %v681
    %v721 = vunpack.c.l.b16 %v682
    %v722 = vunpack.c.l.b16 %v683
    %v723 = vunpack.c.l.b16 %v684
    %v724 = vunpack.c.l.b16 %v685
    %v725 = vunpack.c.l.b16 %v686
    %v726 = vunpack.c.l.b16 %v687
    %v727 = vunpack.c.l.b16 %v688
    %v728 = vunpack.c.l.b16 %v689
    %v729 = vunpack.c.l.b16 %v690
    %v730 = vunpack.c.l.b16 %v691
    %v731 = vunpack.c.l.b16 %v692
    %v732 = vunpack.c.l.b16 %v693
    %v733 = vunpack.c.l.b16 %v694
    %v734 = vunpack.c.l.b16 %v695
    %v735 = vpack.c.b16 %v720, %v719
    %v736 = vpack.c.b16 %v722, %v721
    %v737 = vpack.c.b16 %v724, %v723
    %v738 = vpack.c.b16 %v726, %v725
    %v739 = vpack.c.b16 %v728, %v727
    %v740 = vpack.c.b16 %v730, %v729
    %v741 = vpack.c.b16 %v732, %v731
    %v742 = vpack.c.b16 %v734, %v733
    %751 = vmatprep.subr.bf16.mxu0 0
    %752 = vmatpush1.bf16.xpose.msra.mxu0 %v742
    %753 = vmatprep.subr.bf16.mxu0 0
    %754 = vmatpush1.bf16.xpose.msra.mxu0 %v741
    %755 = vmatprep.subr.bf16.mxu0 0
    %756 = vmatpush1.bf16.xpose.msra.mxu0 %v740
    %757 = vmatprep.subr.bf16.mxu0 0
    %758 = vmatpush1.bf16.xpose.msra.mxu0 %v739
    %759 = vmatprep.subr.bf16.mxu0 0
    %760 = vmatpush1.bf16.xpose.msra.mxu0 %v738
    %761 = vmatprep.subr.bf16.mxu0 0
    %762 = vmatpush1.bf16.xpose.msra.mxu0 %v737
    %763 = vmatprep.subr.bf16.mxu0 0
    %764 = vmatpush1.bf16.xpose.msra.mxu0 %v736
    %765 = vmatprep.subr.bf16.mxu0 0
    %766 = vmatpush1.bf16.xpose.msra.mxu0 %v735
    %767 = vmatprep.subr.bf16.mxu0 0
    %768 = vmatpush2.bf16.xpose.msra.mxu0 0
    %769 = vmatprep.subr.bf16.mxu0 0
    %770 = vmatpush2.bf16.xpose.msra.mxu0 0
    %771 = vmatprep.subr.bf16.mxu0 0
    %772 = vmatpush2.bf16.xpose.msra.mxu0 0
    %773 = vmatprep.subr.bf16.mxu0 0
    %774 = vmatpush2.bf16.xpose.msra.mxu0 0
    %775 = vmatprep.subr.bf16.mxu0 0
    %776 = vmatpush2.bf16.xpose.msra.mxu0 0
    %777 = vmatprep.subr.bf16.mxu0 0
    %778 = vmatpush2.bf16.xpose.msra.mxu0 0
    %779 = vmatprep.subr.bf16.mxu0 0
    %780 = vmatpush2.bf16.xpose.msra.mxu0 0
    %781 = vmatprep.subr.bf16.mxu0 0
    %782 = vmatpush2.bf16.xpose.msra.mxu0 0
    %783 = vmatprep.mubr.bf16.mxu0 0
    %784 = vmatmul.mubr.bf16.gmra.mxu0 %v679
    %v785 = vpop.f32.mrf.mxu0
    %v786 = vadd.f32 %v701, %v785
    %v787 = vpop.f32.mrf.mxu0
    %v788 = vpop.f32.mrf.mxu0
    %v789 = vpop.f32.mrf.mxu0
    %790 = vdwg.mxu0
    %791 = vst [vmem:[#allocation8] sm:$0x3] %v786
    // Predicated region
    $region34: #{tpu_custom_call.1} parent=1 // pred_check
      _
    $region35: #{tpu_custom_call.1} parent=1 // pred_check_branch
      %793 = sbr.rel (0) target = $region37
    $region36: #{tpu_custom_call.1} parent=1 // pred_region
      %s795 = ssub.s32 32, 32
      %796 = vsyncadd [#allocation4], %s795
      %s798 = sshll.u32 [#allocation8], 4
      %s799 = int_to_ptr.vmem [resolvable:$true] %s798
      %801 = dma.vmem_to_hbm [thread:$0]  %s799, 32, %s5, [#allocation4]
    $region37: #{tpu_custom_call.1} parent=1 // pred_fallthru
      _
    // Predicated region
    $region38: #{tpu_custom_call.1} parent=1 // pred_check
      _
    $region39: #{tpu_custom_call.1} parent=1 // pred_check_branch
      %803 = sbr.rel (0) target = $region41
    $region40: #{tpu_custom_call.1} parent=1 // pred_region
      %804 = dma.done [#allocation4], 32
    $region41: #{tpu_custom_call.1} parent=1 // pred_fallthru
      _
    %805 = vsyncpa [#allocation3], 1
    %806 = vsyncpa [#allocation6], 1
    %807 = vsyncpa [#allocation4], 1

// kernel: tpu_custom_call.1
$region0: #{tpu_custom_call.1}
  #allocation0 [shape = 'u32[]', space=smem, size = 0x4, offset = 0x4, fixed_abs, tag = 'smem constant byte address 0x4 - core index']
  #allocation1 [shape = 'u32[144,128]{1,0:T(1,128)}', space=vmem, size = 0x12000, scoped, tag = 'internal scratch']
  %s0 = inlined_call_operand.hbm [shape: bf16[2,1024], index: 0, kind: input, shape index: {}]
  %s1 = inlined_call_operand.hbm [shape: bf16[128,1024], index: 1, kind: input, shape index: {}]
  %s2 = inlined_call_operand.vmem [shape: f32[1,128], index: 2, kind: input, shape index: {}]
  %s3 = inlined_call_operand.hbm [shape: bf16[128,128], index: 3, kind: input, shape index: {}]
  %s4 = inlined_call_operand.vmem [shape: f32[1,128], index: 4, kind: input, shape index: {}]
  %s5 = inlined_call_operand.hbm [shape: f32[2,128], index: 5, kind: output, shape index: {}]
  %s6 = sld [smem:[#allocation0]]
  $region42: #{tpu_custom_call.1} parent=0
    _
  %s8 = ssub.s32 1, %s6
  %s9 = scalar_select 0, %s8, %s6
  $region1: #{tpu_custom_call.1} parent=0
    #allocation2 [shape = 'u8[4096]{0}', space=vmem, size = 0x1000, scoped, tag = 'input window, operand 0, single buffered']
    #allocation3 [shape = 's32[1]{0}', space=sflag, size = 0x4, scoped, tag = 'scoped memory for tpu_custom_call.1']
    #allocation4 [shape = 's32[1]{0}', space=sflag, size = 0x4, scoped, tag = 'scoped memory for tpu_custom_call.1']
    #allocation5 [shape = 'u8[262144]{0}', space=vmem, size = 0x40000, scoped, tag = 'input window, operand 1, single buffered']
    #allocation6 [shape = 's32[1]{0}', space=sflag, size = 0x4, scoped, tag = 'scoped memory for tpu_custom_call.1']
    #allocation7 [shape = 'u8[32768]{0}', space=vmem, size = 0x8000, scoped, tag = 'input window, operand 3, single buffered']
    #allocation8 [shape = 'u8[1024]{0}', space=vmem, size = 0x400, scoped, tag = 'output window, operand 0, single buffered']
    %10 = vsyncpa [#allocation3], 0
    %11 = vsyncpa [#allocation6], 0
    %12 = vsyncpa [#allocation4], 0
    // Predicated region
    $region2: #{tpu_custom_call.1} parent=1 // pred_check
      _
    $region3: #{tpu_custom_call.1} parent=1 // pred_check_branch
      %14 = sbr.rel (0) target = $region5
    $region4: #{tpu_custom_call.1} parent=1 // pred_region
      %s16 = ssub.s32 128, 128
      %17 = vsyncadd [#allocation3], %s16
      %s19 = sshll.u32 [#allocation2], 4
      %s20 = int_to_ptr.vmem [resolvable:$true] %s19
      %22 = dma.hbm_to_vmem [thread:$0]  %s0, 128, %s20, [#allocation3]
    $region5: #{tpu_custom_call.1} parent=1 // pred_fallthru
      _
    // Predicated region
    $region6: #{tpu_custom_call.1} parent=1 // pred_check
      _
    $region7: #{tpu_custom_call.1} parent=1 // pred_check_branch
      %24 = sbr.rel (0) target = $region9
    $region8: #{tpu_custom_call.1} parent=1 // pred_region
      %s26 = ssub.s32 8192, 8192
      %27 = vsyncadd [#allocation6], %s26
      %s28 = sshll.u32 [#allocation5], 4
      %s29 = int_to_ptr.vmem [resolvable:$true] %s28
      %34 = dma.hbm_to_vmem [thread:$0]  %s1, 8192, %s29, [#allocation6], 512, 512, 32
    $region9: #{tpu_custom_call.1} parent=1 // pred_fallthru
      _
    // Predicated region
    $region10: #{tpu_custom_call.1} parent=1 // pred_check
      _
    $region11: #{tpu_custom_call.1} parent=1 // pred_check_branch
      %36 = sbr.rel (0) target = $region13
    $region12: #{tpu_custom_call.1} parent=1 // pred_region
      _
    $region13: #{tpu_custom_call.1} parent=1 // pred_fallthru
      _
    // Predicated region
    $region14: #{tpu_custom_call.1} parent=1 // pred_check
      _
    $region15: #{tpu_custom_call.1} parent=1 // pred_check_branch
      %38 = sbr.rel (0) target = $region17
    $region16: #{tpu_custom_call.1} parent=1 // pred_region
      %s40 = ssub.s32 1024, 1024
      %41 = vsyncadd [#allocation6], %s40
      %s42 = sshll.u32 [#allocation7], 4
      %s43 = int_to_ptr.vmem [resolvable:$true] %s42
      %48 = dma.hbm_to_vmem [thread:$0]  %s3, 1024, %s43, [#allocation6], 64, 64, 4
    $region17: #{tpu_custom_call.1} parent=1 // pred_fallthru
      _
    // Predicated region
    $region18: #{tpu_custom_call.1} parent=1 // pred_check
      _
    $region19: #{tpu_custom_call.1} parent=1 // pred_check_branch
      %50 = sbr.rel (0) target = $region21
    $region20: #{tpu_custom_call.1} parent=1 // pred_region
      _
    $region21: #{tpu_custom_call.1} parent=1 // pred_fallthru
      _
    // Predicated region
    $region22: #{tpu_custom_call.1} parent=1 // pred_check
      _
    $region23: #{tpu_custom_call.1} parent=1 // pred_check_branch
      %52 = sbr.rel (0) target = $region25
    $region24: #{tpu_custom_call.1} parent=1 // pred_region
      %53 = dma.done [#allocation3], 128
    $region25: #{tpu_custom_call.1} parent=1 // pred_fallthru
      _
    // Predicated region
    $region26: #{tpu_custom_call.1} parent=1 // pred_check
      _
    $region27: #{tpu_custom_call.1} parent=1 // pred_check_branch
      %55 = sbr.rel (0) target = $region29
    $region28: #{tpu_custom_call.1} parent=1 // pred_region
      %56 = dma.done [#allocation6], 8192
    $region29: #{tpu_custom_call.1} parent=1 // pred_fallthru
      _
    // Predicated region
    $region30: #{tpu_custom_call.1} parent=1 // pred_check
      _
    $region31: #{tpu_custom_call.1} parent=1 // pred_check_branch
      %58 = sbr.rel (0) target = $region33
    $region32: #{tpu_custom_call.1} parent=1 // pred_region
      %59 = dma.done [#allocation6], 1024
    $region33: #{tpu_custom_call.1} parent=1 // pred_fallthru
      _
    %v61 = vld [vmem:[#allocation2] sm:$0xff]
    %v62 = vld [vmem:[#allocation5] sm:$0xff]
    %v63 = vld [vmem:[#allocation5 + $0x8] sm:$0xff]
    %v64 = vld [vmem:[#allocation5 + $0x10] sm:$0xff]
    %v65 = vld [vmem:[#allocation5 + $0x18] sm:$0xff]
    %v66 = vld [vmem:[#allocation5 + $0x20] sm:$0xff]
    %v67 = vld [vmem:[#allocation5 + $0x28] sm:$0xff]
    %v68 = vld [vmem:[#allocation5 + $0x30] sm:$0xff]
    %v69 = vld [vmem:[#allocation5 + $0x38] sm:$0xff]
    %v70 = vld [vmem:[#allocation5 + $0x40] sm:$0xff]
    %v71 = vld [vmem:[#allocation5 + $0x48] sm:$0xff]
    %v72 = vld [vmem:[#allocation5 + $0x50] sm:$0xff]
    %v73 = vld [vmem:[#allocation5 + $0x58] sm:$0xff]
    %v74 = vld [vmem:[#allocation5 + $0x60] sm:$0xff]
    %v75 = vld [vmem:[#allocation5 + $0x68] sm:$0xff]
    %v76 = vld [vmem:[#allocation5 + $0x70] sm:$0xff]
    %v77 = vld [vmem:[#allocation5 + $0x78] sm:$0xff]
    %v78 = vld [vmem:[#allocation5 + $0x80] sm:$0xff]
    %v79 = vld [vmem:[#allocation5 + $0x88] sm:$0xff]
    %v80 = vld [vmem:[#allocation5 + $0x90] sm:$0xff]
    %v81 = vld [vmem:[#allocation5 + $0x98] sm:$0xff]
    %v82 = vld [vmem:[#allocation5 + $0xa0] sm:$0xff]
    %v83 = vld [vmem:[#allocation5 + $0xa8] sm:$0xff]
    %v84 = vld [vmem:[#allocation5 + $0xb0] sm:$0xff]
    %v85 = vld [vmem:[#allocation5 + $0xb8] sm:$0xff]
    %v86 = vld [vmem:[#allocation5 + $0xc0] sm:$0xff]
    %v87 = vld [vmem:[#allocation5 + $0xc8] sm:$0xff]
    %v88 = vld [vmem:[#allocation5 + $0xd0] sm:$0xff]
    %v89 = vld [vmem:[#allocation5 + $0xd8] sm:$0xff]
    %v90 = vld [vmem:[#allocation5 + $0xe0] sm:$0xff]
    %v91 = vld [vmem:[#allocation5 + $0xe8] sm:$0xff]
    %v92 = vld [vmem:[#allocation5 + $0xf0] sm:$0xff]
    %v93 = vld [vmem:[#allocation5 + $0xf8] sm:$0xff]
    %v94 = vld [vmem:[#allocation5 + $0x100] sm:$0xff]
    %v95 = vld [vmem:[#allocation5 + $0x108] sm:$0xff]
    %v96 = vld [vmem:[#allocation5 + $0x110] sm:$0xff]
    %v97 = vld [vmem:[#allocation5 + $0x118] sm:$0xff]
    %v98 = vld [vmem:[#allocation5 + $0x120] sm:$0xff]
    %v99 = vld [vmem:[#allocation5 + $0x128] sm:$0xff]
    %v100 = vld [vmem:[#allocation5 + $0x130] sm:$0xff]
    %v101 = vld [vmem:[#allocation5 + $0x138] sm:$0xff]
    %v102 = vld [vmem:[#allocation5 + $0x140] sm:$0xff]
    %v103 = vld [vmem:[#allocation5 + $0x148] sm:$0xff]
    %v104 = vld [vmem:[#allocation5 + $0x150] sm:$0xff]
    %v105 = vld [vmem:[#allocation5 + $0x158] sm:$0xff]
    %v106 = vld [vmem:[#allocation5 + $0x160] sm:$0xff]
    %v107 = vld [vmem:[#allocation5 + $0x168] sm:$0xff]
    %v108 = vld [vmem:[#allocation5 + $0x170] sm:$0xff]
    %v109 = vld [vmem:[#allocation5 + $0x178] sm:$0xff]
    %v110 = vld [vmem:[#allocation5 + $0x180] sm:$0xff]
    %v111 = vld [vmem:[#allocation5 + $0x188] sm:$0xff]
    %v112 = vld [vmem:[#allocation5 + $0x190] sm:$0xff]
    %v113 = vld [vmem:[#allocation5 + $0x198] sm:$0xff]
    %v114 = vld [vmem:[#allocation5 + $0x1a0] sm:$0xff]
    %v115 = vld [vmem:[#allocation5 + $0x1a8] sm:$0xff]
    %v116 = vld [vmem:[#allocation5 + $0x1b0] sm:$0xff]
    %v117 = vld [vmem:[#allocation5 + $0x1b8] sm:$0xff]
    %v118 = vld [vmem:[#allocation5 + $0x1c0] sm:$0xff]
    %v119 = vld [vmem:[#allocation5 + $0x1c8] sm:$0xff]
    %v120 = vld [vmem:[#allocation5 + $0x1d0] sm:$0xff]
    %v121 = vld [vmem:[#allocation5 + $0x1d8] sm:$0xff]
    %v122 = vld [vmem:[#allocation5 + $0x1e0] sm:$0xff]
    %v123 = vld [vmem:[#allocation5 + $0x1e8] sm:$0xff]
    %v124 = vld [vmem:[#allocation5 + $0x1f0] sm:$0xff]
    %v125 = vld [vmem:[#allocation5 + $0x1f8] sm:$0xff]
    %v126 = vld [vmem:[%s2] sm:$0x1]
    %v128 = vlaneseq
    %v129 = vshrl.u32 %v128, 7
    %v130 = vsub.s32 0, %v129
    %v131 = vrot.slane %v126, %v130
    %v134 = vcombine.high %v61, %v61
    %v136 = vunpack.c.l.s4 1966171168
    %v137 = vunpack.c.0.s8 %v136
    %v138 = vlaneseq
    %v139 = vshrl.u32 %v138, 7
    %v140 = vsub.s32 %v137, %v139
    %v141 = vrot.slane %v61, %v140
    %v143 = vunpack.c.l.s4 1966171168
    %v144 = vunpack.c.0.s8 %v143
    %v145 = vlaneseq
    %v146 = vshrl.u32 %v145, 7
    %v147 = vsub.s32 %v144, %v146
    %v148 = vrot.slane %v134, %v147
    %v149 = vcombine.high %v141, %v141
    %v150 = vcombine.high %v148, %v148
    %v152 = vunpack.c.l.s4 1966171168
    %v153 = vunpack.c.0.s8 %v152
    %v154 = vlaneseq
    %v155 = vshrl.u32 %v154, 7
    %v156 = vsub.s32 %v153, %v155
    %v157 = vrot.slane %v141, %v156
    %v159 = vunpack.c.l.s4 1966171168
    %v160 = vunpack.c.0.s8 %v159
    %v161 = vlaneseq
    %v162 = vshrl.u32 %v161, 7
    %v163 = vsub.s32 %v160, %v162
    %v164 = vrot.slane %v148, %v163
    %v166 = vunpack.c.l.s4 1966171168
    %v167 = vunpack.c.0.s8 %v166
    %v168 = vlaneseq
    %v169 = vshrl.u32 %v168, 7
    %v170 = vsub.s32 %v167, %v169
    %v171 = vrot.slane %v149, %v170
    %v173 = vunpack.c.l.s4 1966171168
    %v174 = vunpack.c.0.s8 %v173
    %v175 = vlaneseq
    %v176 = vshrl.u32 %v175, 7
    %v177 = vsub.s32 %v174, %v176
    %v178 = vrot.slane %v150, %v177
    %v179 = vcombine.high %v157, %v157
    %v180 = vcombine.high %v164, %v164
    %v181 = vcombine.high %v171, %v171
    %v182 = vcombine.high %v178, %v178
    %v255 = vunpack.c.l.b16 %v62
    %v256 = vunpack.c.h.b16 %v62
    %v257 = vunpack.c.l.b16 %v63
    %v258 = vunpack.c.h.b16 %v63
    %v259 = vunpack.c.l.b16 %v64
    %v260 = vunpack.c.h.b16 %v64
    %v261 = vunpack.c.l.b16 %v65
    %v262 = vunpack.c.h.b16 %v65
    %v263 = vunpack.c.l.b16 %v66
    %v264 = vunpack.c.h.b16 %v66
    %v265 = vunpack.c.l.b16 %v67
    %v266 = vunpack.c.h.b16 %v67
    %v267 = vunpack.c.l.b16 %v68
    %v268 = vunpack.c.h.b16 %v68
    %v269 = vunpack.c.l.b16 %v69
    %v270 = vunpack.c.h.b16 %v69
    %v271 = vunpack.c.l.b16 %v70
    %v272 = vunpack.c.h.b16 %v70
    %v273 = vunpack.c.l.b16 %v71
    %v274 = vunpack.c.h.b16 %v71
    %v275 = vunpack.c.l.b16 %v72
    %v276 = vunpack.c.h.b16 %v72
    %v277 = vunpack.c.l.b16 %v73
    %v278 = vunpack.c.h.b16 %v73
    %v279 = vunpack.c.l.b16 %v74
    %v280 = vunpack.c.h.b16 %v74
    %v281 = vunpack.c.l.b16 %v75
    %v282 = vunpack.c.h.b16 %v75
    %v283 = vunpack.c.l.b16 %v76
    %v284 = vunpack.c.h.b16 %v76
    %v285 = vunpack.c.l.b16 %v77
    %v286 = vunpack.c.h.b16 %v77
    %v287 = vunpack.c.l.b16 %v78
    %v288 = vunpack.c.h.b16 %v78
    %v289 = vunpack.c.l.b16 %v79
    %v290 = vunpack.c.h.b16 %v79
    %v291 = vunpack.c.l.b16 %v80
    %v292 = vunpack.c.h.b16 %v80
    %v293 = vunpack.c.l.b16 %v81
    %v294 = vunpack.c.h.b16 %v81
    %v295 = vunpack.c.l.b16 %v82
    %v296 = vunpack.c.h.b16 %v82
    %v297 = vunpack.c.l.b16 %v83
    %v298 = vunpack.c.h.b16 %v83
    %v299 = vunpack.c.l.b16 %v84
    %v300 = vunpack.c.h.b16 %v84
    %v301 = vunpack.c.l.b16 %v85
    %v302 = vunpack.c.h.b16 %v85
    %v303 = vunpack.c.l.b16 %v86
    %v304 = vunpack.c.h.b16 %v86
    %v305 = vunpack.c.l.b16 %v87
    %v306 = vunpack.c.h.b16 %v87
    %v307 = vunpack.c.l.b16 %v88
    %v308 = vunpack.c.h.b16 %v88
    %v309 = vunpack.c.l.b16 %v89
    %v310 = vunpack.c.h.b16 %v89
    %v311 = vunpack.c.l.b16 %v90
    %v312 = vunpack.c.h.b16 %v90
    %v313 = vunpack.c.l.b16 %v91
    %v314 = vunpack.c.h.b16 %v91
    %v315 = vunpack.c.l.b16 %v92
    %v316 = vunpack.c.h.b16 %v92
    %v317 = vunpack.c.l.b16 %v93
    %v318 = vunpack.c.h.b16 %v93
    %v319 = vunpack.c.l.b16 %v94
    %v320 = vunpack.c.h.b16 %v94
    %v321 = vunpack.c.l.b16 %v95
    %v322 = vunpack.c.h.b16 %v95
    %v323 = vunpack.c.l.b16 %v96
    %v324 = vunpack.c.h.b16 %v96
    %v325 = vunpack.c.l.b16 %v97
    %v326 = vunpack.c.h.b16 %v97
    %v327 = vunpack.c.l.b16 %v98
    %v328 = vunpack.c.h.b16 %v98
    %v329 = vunpack.c.l.b16 %v99
    %v330 = vunpack.c.h.b16 %v99
    %v331 = vunpack.c.l.b16 %v100
    %v332 = vunpack.c.h.b16 %v100
    %v333 = vunpack.c.l.b16 %v101
    %v334 = vunpack.c.h.b16 %v101
    %v335 = vunpack.c.l.b16 %v102
    %v336 = vunpack.c.h.b16 %v102
    %v337 = vunpack.c.l.b16 %v103
    %v338 = vunpack.c.h.b16 %v103
    %v339 = vunpack.c.l.b16 %v104
    %v340 = vunpack.c.h.b16 %v104
    %v341 = vunpack.c.l.b16 %v105
    %v342 = vunpack.c.h.b16 %v105
    %v343 = vunpack.c.l.b16 %v106
    %v344 = vunpack.c.h.b16 %v106
    %v345 = vunpack.c.l.b16 %v107
    %v346 = vunpack.c.h.b16 %v107
    %v347 = vunpack.c.l.b16 %v108
    %v348 = vunpack.c.h.b16 %v108
    %v349 = vunpack.c.l.b16 %v109
    %v350 = vunpack.c.h.b16 %v109
    %v351 = vunpack.c.l.b16 %v110
    %v352 = vunpack.c.h.b16 %v110
    %v353 = vunpack.c.l.b16 %v111
    %v354 = vunpack.c.h.b16 %v111
    %v355 = vunpack.c.l.b16 %v112
    %v356 = vunpack.c.h.b16 %v112
    %v357 = vunpack.c.l.b16 %v113
    %v358 = vunpack.c.h.b16 %v113
    %v359 = vunpack.c.l.b16 %v114
    %v360 = vunpack.c.h.b16 %v114
    %v361 = vunpack.c.l.b16 %v115
    %v362 = vunpack.c.h.b16 %v115
    %v363 = vunpack.c.l.b16 %v116
    %v364 = vunpack.c.h.b16 %v116
    %v365 = vunpack.c.l.b16 %v117
    %v366 = vunpack.c.h.b16 %v117
    %v367 = vunpack.c.l.b16 %v118
    %v368 = vunpack.c.h.b16 %v118
    %v369 = vunpack.c.l.b16 %v119
    %v370 = vunpack.c.h.b16 %v119
    %v371 = vunpack.c.l.b16 %v120
    %v372 = vunpack.c.h.b16 %v120
    %v373 = vunpack.c.l.b16 %v121
    %v374 = vunpack.c.h.b16 %v121
    %v375 = vunpack.c.l.b16 %v122
    %v376 = vunpack.c.h.b16 %v122
    %v377 = vunpack.c.l.b16 %v123
    %v378 = vunpack.c.h.b16 %v123
    %v379 = vunpack.c.l.b16 %v124
    %v380 = vunpack.c.h.b16 %v124
    %v381 = vunpack.c.l.b16 %v125
    %v382 = vunpack.c.h.b16 %v125
    %v383 = vpack.c.b16 %v263, %v255
    %v384 = vpack.c.b16 %v264, %v256
    %v385 = vpack.c.b16 %v265, %v257
    %v386 = vpack.c.b16 %v266, %v258
    %v387 = vpack.c.b16 %v267, %v259
    %v388 = vpack.c.b16 %v268, %v260
    %v389 = vpack.c.b16 %v269, %v261
    %v390 = vpack.c.b16 %v270, %v262
    %v391 = vpack.c.b16 %v279, %v271
    %v392 = vpack.c.b16 %v280, %v272
    %v393 = vpack.c.b16 %v281, %v273
    %v394 = vpack.c.b16 %v282, %v274
    %v395 = vpack.c.b16 %v283, %v275
    %v396 = vpack.c.b16 %v284, %v276
    %v397 = vpack.c.b16 %v285, %v277
    %v398 = vpack.c.b16 %v286, %v278
    %v399 = vpack.c.b16 %v295, %v287
    %v400 = vpack.c.b16 %v296, %v288
    %v401 = vpack.c.b16 %v297, %v289
    %v402 = vpack.c.b16 %v298, %v290
    %v403 = vpack.c.b16 %v299, %v291
    %v404 = vpack.c.b16 %v300, %v292
    %v405 = vpack.c.b16 %v301, %v293
    %v406 = vpack.c.b16 %v302, %v294
    %v407 = vpack.c.b16 %v311, %v303
    %v408 = vpack.c.b16 %v312, %v304
    %v409 = vpack.c.b16 %v313, %v305
    %v410 = vpack.c.b16 %v314, %v306
    %v411 = vpack.c.b16 %v315, %v307
    %v412 = vpack.c.b16 %v316, %v308
    %v413 = vpack.c.b16 %v317, %v309
    %v414 = vpack.c.b16 %v318, %v310
    %v415 = vpack.c.b16 %v327, %v319
    %v416 = vpack.c.b16 %v328, %v320
    %v417 = vpack.c.b16 %v329, %v321
    %v418 = vpack.c.b16 %v330, %v322
    %v419 = vpack.c.b16 %v331, %v323
    %v420 = vpack.c.b16 %v332, %v324
    %v421 = vpack.c.b16 %v333, %v325
    %v422 = vpack.c.b16 %v334, %v326
    %v423 = vpack.c.b16 %v343, %v335
    %v424 = vpack.c.b16 %v344, %v336
    %v425 = vpack.c.b16 %v345, %v337
    %v426 = vpack.c.b16 %v346, %v338
    %v427 = vpack.c.b16 %v347, %v339
    %v428 = vpack.c.b16 %v348, %v340
    %v429 = vpack.c.b16 %v349, %v341
    %v430 = vpack.c.b16 %v350, %v342
    %v431 = vpack.c.b16 %v359, %v351
    %v432 = vpack.c.b16 %v360, %v352
    %v433 = vpack.c.b16 %v361, %v353
    %v434 = vpack.c.b16 %v362, %v354
    %v435 = vpack.c.b16 %v363, %v355
    %v436 = vpack.c.b16 %v364, %v356
    %v437 = vpack.c.b16 %v365, %v357
    %v438 = vpack.c.b16 %v366, %v358
    %v439 = vpack.c.b16 %v375, %v367
    %v440 = vpack.c.b16 %v376, %v368
    %v441 = vpack.c.b16 %v377, %v369
    %v442 = vpack.c.b16 %v378, %v370
    %v443 = vpack.c.b16 %v379, %v371
    %v444 = vpack.c.b16 %v380, %v372
    %v445 = vpack.c.b16 %v381, %v373
    %v446 = vpack.c.b16 %v382, %v374
    %511 = vmatprep.subr.bf16.mxu0 %v440
    %512 = vmatpush1.bf16.xpose.msra.mxu0 %v439
    %513 = vmatprep.subr.bf16.mxu0 %v432
    %514 = vmatpush1.bf16.xpose.msra.mxu0 %v431
    %515 = vmatprep.subr.bf16.mxu0 %v424
    %516 = vmatpush1.bf16.xpose.msra.mxu0 %v423
    %517 = vmatprep.subr.bf16.mxu0 %v416
    %518 = vmatpush1.bf16.xpose.msra.mxu0 %v415
    %519 = vmatprep.subr.bf16.mxu0 %v408
    %520 = vmatpush1.bf16.xpose.msra.mxu0 %v407
    %521 = vmatprep.subr.bf16.mxu0 %v400
    %522 = vmatpush1.bf16.xpose.msra.mxu0 %v399
    %523 = vmatprep.subr.bf16.mxu0 %v392
    %524 = vmatpush1.bf16.xpose.msra.mxu0 %v391
    %525 = vmatprep.subr.bf16.mxu0 %v384
    %526 = vmatpush1.bf16.xpose.msra.mxu0 %v383
    %527 = vmatprep.subr.bf16.mxu0 0
    %528 = vmatpush2.bf16.xpose.msra.mxu0 0
    %529 = vmatprep.subr.bf16.mxu0 0
    %530 = vmatpush2.bf16.xpose.msra.mxu0 0
    %531 = vmatprep.subr.bf16.mxu0 0
    %532 = vmatpush2.bf16.xpose.msra.mxu0 0
    %533 = vmatprep.subr.bf16.mxu0 0
    %534 = vmatpush2.bf16.xpose.msra.mxu0 0
    %535 = vmatprep.subr.bf16.mxu0 0
    %536 = vmatpush2.bf16.xpose.msra.mxu0 0
    %537 = vmatprep.subr.bf16.mxu0 0
    %538 = vmatpush2.bf16.xpose.msra.mxu0 0
    %539 = vmatprep.subr.bf16.mxu0 0
    %540 = vmatpush2.bf16.xpose.msra.mxu0 0
    %541 = vmatprep.subr.bf16.mxu0 0
    %542 = vmatpush2.bf16.xpose.msra.mxu0 0
    %543 = vmatprep.mubr.bf16.mxu0 %v171
    %544 = vmatmul.mubr.bf16.gmra.mxu0 %v157
    %v545 = vpop.f32.mrf.mxu0
    %v546 = vadd.f32 %v131, %v545
    %v547 = vpop.f32.mrf.mxu0
    %v548 = vpop.f32.mrf.mxu0
    %v549 = vpop.f32.mrf.mxu0
    %550 = vdwg.mxu0
    %551 = vmatprep.subr.bf16.mxu0 %v442
    %552 = vmatpush1.bf16.xpose.msra.mxu0 %v441
    %553 = vmatprep.subr.bf16.mxu0 %v434
    %554 = vmatpush1.bf16.xpose.msra.mxu0 %v433
    %555 = vmatprep.subr.bf16.mxu0 %v426
    %556 = vmatpush1.bf16.xpose.msra.mxu0 %v425
    %557 = vmatprep.subr.bf16.mxu0 %v418
    %558 = vmatpush1.bf16.xpose.msra.mxu0 %v417
    %559 = vmatprep.subr.bf16.mxu0 %v410
    %560 = vmatpush1.bf16.xpose.msra.mxu0 %v409
    %561 = vmatprep.subr.bf16.mxu0 %v402
    %562 = vmatpush1.bf16.xpose.msra.mxu0 %v401
    %563 = vmatprep.subr.bf16.mxu0 %v394
    %564 = vmatpush1.bf16.xpose.msra.mxu0 %v393
    %565 = vmatprep.subr.bf16.mxu0 %v386
    %566 = vmatpush1.bf16.xpose.msra.mxu0 %v385
    %567 = vmatprep.subr.bf16.mxu0 0
    %568 = vmatpush2.bf16.xpose.msra.mxu0 0
    %569 = vmatprep.subr.bf16.mxu0 0
    %570 = vmatpush2.bf16.xpose.msra.mxu0 0
    %571 = vmatprep.subr.bf16.mxu0 0
    %572 = vmatpush2.bf16.xpose.msra.mxu0 0
    %573 = vmatprep.subr.bf16.mxu0 0
    %574 = vmatpush2.bf16.xpose.msra.mxu0 0
    %575 = vmatprep.subr.bf16.mxu0 0
    %576 = vmatpush2.bf16.xpose.msra.mxu0 0
    %577 = vmatprep.subr.bf16.mxu0 0
    %578 = vmatpush2.bf16.xpose.msra.mxu0 0
    %579 = vmatprep.subr.bf16.mxu0 0
    %580 = vmatpush2.bf16.xpose.msra.mxu0 0
    %581 = vmatprep.subr.bf16.mxu0 0
    %582 = vmatpush2.bf16.xpose.msra.mxu0 0
    %583 = vmatprep.mubr.bf16.mxu0 %v181
    %584 = vmatmul.mubr.bf16.gmra.mxu0 %v179
    %v585 = vpop.f32.mrf.mxu0
    %v586 = vadd.f32 %v546, %v585
    %v587 = vpop.f32.mrf.mxu0
    %v588 = vpop.f32.mrf.mxu0
    %v589 = vpop.f32.mrf.mxu0
    %590 = vdwg.mxu0
    %591 = vmatprep.subr.bf16.mxu0 %v444
    %592 = vmatpush1.bf16.xpose.msra.mxu0 %v443
    %593 = vmatprep.subr.bf16.mxu0 %v436
    %594 = vmatpush1.bf16.xpose.msra.mxu0 %v435
    %595 = vmatprep.subr.bf16.mxu0 %v428
    %596 = vmatpush1.bf16.xpose.msra.mxu0 %v427
    %597 = vmatprep.subr.bf16.mxu0 %v420
    %598 = vmatpush1.bf16.xpose.msra.mxu0 %v419
    %599 = vmatprep.subr.bf16.mxu0 %v412
    %600 = vmatpush1.bf16.xpose.msra.mxu0 %v411
    %601 = vmatprep.subr.bf16.mxu0 %v404
    %602 = vmatpush1.bf16.xpose.msra.mxu0 %v403
    %603 = vmatprep.subr.bf16.mxu0 %v396
    %604 = vmatpush1.bf16.xpose.msra.mxu0 %v395
    %605 = vmatprep.subr.bf16.mxu0 %v388
    %606 = vmatpush1.bf16.xpose.msra.mxu0 %v387
    %607 = vmatprep.subr.bf16.mxu0 0
    %608 = vmatpush2.bf16.xpose.msra.mxu0 0
    %609 = vmatprep.subr.bf16.mxu0 0
    %610 = vmatpush2.bf16.xpose.msra.mxu0 0
    %611 = vmatprep.subr.bf16.mxu0 0
    %612 = vmatpush2.bf16.xpose.msra.mxu0 0
    %613 = vmatprep.subr.bf16.mxu0 0
    %614 = vmatpush2.bf16.xpose.msra.mxu0 0
    %615 = vmatprep.subr.bf16.mxu0 0
    %616 = vmatpush2.bf16.xpose.msra.mxu0 0
    %617 = vmatprep.subr.bf16.mxu0 0
    %618 = vmatpush2.bf16.xpose.msra.mxu0 0
    %619 = vmatprep.subr.bf16.mxu0 0
    %620 = vmatpush2.bf16.xpose.msra.mxu0 0
    %621 = vmatprep.subr.bf16.mxu0 0
    %622 = vmatpush2.bf16.xpose.msra.mxu0 0
    %623 = vmatprep.mubr.bf16.mxu0 %v178
    %624 = vmatmul.mubr.bf16.gmra.mxu0 %v164
    %v625 = vpop.f32.mrf.mxu0
    %v626 = vadd.f32 %v586, %v625
    %v627 = vpop.f32.mrf.mxu0
    %v628 = vpop.f32.mrf.mxu0
    %v629 = vpop.f32.mrf.mxu0
    %630 = vdwg.mxu0
    %631 = vmatprep.subr.bf16.mxu0 %v446
    %632 = vmatpush1.bf16.xpose.msra.mxu0 %v445
    %633 = vmatprep.subr.bf16.mxu0 %v438
    %634 = vmatpush1.bf16.xpose.msra.mxu0 %v437
    %635 = vmatprep.subr.bf16.mxu0 %v430
    %636 = vmatpush1.bf16.xpose.msra.mxu0 %v429
    %637 = vmatprep.subr.bf16.mxu0 %v422
    %638 = vmatpush1.bf16.xpose.msra.mxu0 %v421
    %639 = vmatprep.subr.bf16.mxu0 %v414
    %640 = vmatpush1.bf16.xpose.msra.mxu0 %v413
    %641 = vmatprep.subr.bf16.mxu0 %v406
    %642 = vmatpush1.bf16.xpose.msra.mxu0 %v405
    %643 = vmatprep.subr.bf16.mxu0 %v398
    %644 = vmatpush1.bf16.xpose.msra.mxu0 %v397
    %645 = vmatprep.subr.bf16.mxu0 %v390
    %646 = vmatpush1.bf16.xpose.msra.mxu0 %v389
    %647 = vmatprep.subr.bf16.mxu0 0
    %648 = vmatpush2.bf16.xpose.msra.mxu0 0
    %649 = vmatprep.subr.bf16.mxu0 0
    %650 = vmatpush2.bf16.xpose.msra.mxu0 0
    %651 = vmatprep.subr.bf16.mxu0 0
    %652 = vmatpush2.bf16.xpose.msra.mxu0 0
    %653 = vmatprep.subr.bf16.mxu0 0
    %654 = vmatpush2.bf16.xpose.msra.mxu0 0
    %655 = vmatprep.subr.bf16.mxu0 0
    %656 = vmatpush2.bf16.xpose.msra.mxu0 0
    %657 = vmatprep.subr.bf16.mxu0 0
    %658 = vmatpush2.bf16.xpose.msra.mxu0 0
    %659 = vmatprep.subr.bf16.mxu0 0
    %660 = vmatpush2.bf16.xpose.msra.mxu0 0
    %661 = vmatprep.subr.bf16.mxu0 0
    %662 = vmatpush2.bf16.xpose.msra.mxu0 0
    %663 = vmatprep.mubr.bf16.mxu0 %v182
    %664 = vmatmul.mubr.bf16.gmra.mxu0 %v180
    %v665 = vpop.f32.mrf.mxu0
    %v666 = vadd.f32 %v626, %v665
    %v667 = vpop.f32.mrf.mxu0
    %v668 = vpop.f32.mrf.mxu0
    %v669 = vpop.f32.mrf.mxu0
    %670 = vdwg.mxu0
    %v671 = vxor.u32 %v666, 2147483648
    %v672 = vmul.f32 %v671, 1.442695
    %v673 = vpow.pop %v672
    %v674 = vadd.f32 %v673, 1.0
    %v675 = vrcp.pop %v674
    %v676 = vmul.f32 1.0, %v675
    %v677 = vmax.f32 %v666, 0.0
    %v678 = vadd.f32 %v676, %v677
    %v679 = vpack.c.bf16 %v678, %v678
    %v680 = vld [vmem:[#allocation7] sm:$0xf]
    %v681 = vld [vmem:[#allocation7 + $0x4] sm:$0xf]
    %v682 = vld [vmem:[#allocation7 + $0x8] sm:$0xf]
    %v683 = vld [vmem:[#allocation7 + $0xc] sm:$0xf]
    %v684 = vld [vmem:[#allocation7 + $0x10] sm:$0xf]
    %v685 = vld [vmem:[#allocation7 + $0x14] sm:$0xf]
    %v686 = vld [vmem:[#allocation7 + $0x18] sm:$0xf]
    %v687 = vld [vmem:[#allocation7 + $0x1c] sm:$0xf]
    %v688 = vld [vmem:[#allocation7 + $0x20] sm:$0xf]
    %v689 = vld [vmem:[#allocation7 + $0x24] sm:$0xf]
    %v690 = vld [vmem:[#allocation7 + $0x28] sm:$0xf]
    %v691 = vld [vmem:[#allocation7 + $0x2c] sm:$0xf]
    %v692 = vld [vmem:[#allocation7 + $0x30] sm:$0xf]
    %v693 = vld [vmem:[#allocation7 + $0x34] sm:$0xf]
    %v694 = vld [vmem:[#allocation7 + $0x38] sm:$0xf]
    %v695 = vld [vmem:[#allocation7 + $0x3c] sm:$0xf]
    %v696 = vld [vmem:[%s4] sm:$0x1]
    %v698 = vlaneseq
    %v699 = vshrl.u32 %v698, 7
    %v700 = vsub.s32 0, %v699
    %v701 = vrot.slane %v696, %v700
    %v719 = vunpack.c.l.b16 %v680
    %v720 = vunpack.c.l.b16 %v681
    %v721 = vunpack.c.l.b16 %v682
    %v722 = vunpack.c.l.b16 %v683
    %v723 = vunpack.c.l.b16 %v684
    %v724 = vunpack.c.l.b16 %v685
    %v725 = vunpack.c.l.b16 %v686
    %v726 = vunpack.c.l.b16 %v687
    %v727 = vunpack.c.l.b16 %v688
    %v728 = vunpack.c.l.b16 %v689
    %v729 = vunpack.c.l.b16 %v690
    %v730 = vunpack.c.l.b16 %v691
    %v731 = vunpack.c.l.b16 %v692
    %v732 = vunpack.c.l.b16 %v693
    %v733 = vunpack.c.l.b16 %v694
    %v734 = vunpack.c.l.b16 %v695
    %v735 = vpack.c.b16 %v720, %v719
    %v736 = vpack.c.b16 %v722, %v721
    %v737 = vpack.c.b16 %v724, %v723
    %v738 = vpack.c.b16 %v726, %v725
    %v739 = vpack.c.b16 %v728, %v727
    %v740 = vpack.c.b16 %v730, %v729
    %v741 = vpack.c.b16 %v732, %v731
    %v742 = vpack.c.b16 %v734, %v733
    %751 = vmatprep.subr.bf16.mxu0 0
    %752 = vmatpush1.bf16.xpose.msra.mxu0 %v742
    %753 = vmatprep.subr.bf16.mxu0 0
    %754 = vmatpush1.bf16.xpose.msra.mxu0 %v741
    %755 = vmatprep.subr.bf16.mxu0 0
    %756 = vmatpush1.bf16.xpose.msra.mxu0 %v740
    %757 = vmatprep.subr.bf16.mxu0 0
    %758 = vmatpush1.bf16.xpose.msra.mxu0 %v739
    %759 = vmatprep.subr.bf16.mxu0 0
    %760 = vmatpush1.bf16.xpose.msra.mxu0 %v738
    %761 = vmatprep.subr.bf16.mxu0 0
    %762 = vmatpush1.bf16.xpose.msra.mxu0 %v737
    %763 = vmatprep.subr.bf16.mxu0 0
    %764 = vmatpush1.bf16.xpose.msra.mxu0 %v736
    %765 = vmatprep.subr.bf16.mxu0 0
    %766 = vmatpush1.bf16.xpose.msra.mxu0 %v735
    %767 = vmatprep.subr.bf16.mxu0 0
    %768 = vmatpush2.bf16.xpose.msra.mxu0 0
    %769 = vmatprep.subr.bf16.mxu0 0
    %770 = vmatpush2.bf16.xpose.msra.mxu0 0
    %771 = vmatprep.subr.bf16.mxu0 0
    %772 = vmatpush2.bf16.xpose.msra.mxu0 0
    %773 = vmatprep.subr.bf16.mxu0 0
    %774 = vmatpush2.bf16.xpose.msra.mxu0 0
    %775 = vmatprep.subr.bf16.mxu0 0
    %776 = vmatpush2.bf16.xpose.msra.mxu0 0
    %777 = vmatprep.subr.bf16.mxu0 0
    %778 = vmatpush2.bf16.xpose.msra.mxu0 0
    %779 = vmatprep.subr.bf16.mxu0 0
    %780 = vmatpush2.bf16.xpose.msra.mxu0 0
    %781 = vmatprep.subr.bf16.mxu0 0
    %782 = vmatpush2.bf16.xpose.msra.mxu0 0
    %783 = vmatprep.mubr.bf16.mxu0 0
    %784 = vmatmul.mubr.bf16.gmra.mxu0 %v679
    %v785 = vpop.f32.mrf.mxu0
    %v786 = vadd.f32 %v701, %v785
    %v787 = vpop.f32.mrf.mxu0
    %v788 = vpop.f32.mrf.mxu0
    %v789 = vpop.f32.mrf.mxu0
    %790 = vdwg.mxu0
    %791 = vst [vmem:[#allocation8] sm:$0x3] %v786
    // Predicated region
    $region34: #{tpu_custom_call.1} parent=1 // pred_check
      _
    $region35: #{tpu_custom_call.1} parent=1 // pred_check_branch
      %793 = sbr.rel (0) target = $region37
    $region36: #{tpu_custom_call.1} parent=1 // pred_region
      %s795 = ssub.s32 32, 32
      %796 = vsyncadd [#allocation4], %s795
      %s798 = sshll.u32 [#allocation8], 4
      %s799 = int_to_ptr.vmem [resolvable:$true] %s798
      %801 = dma.vmem_to_hbm [thread:$0]  %s799, 32, %s5, [#allocation4]
    $region37: #{tpu_custom_call.1} parent=1 // pred_fallthru
      _
    // Predicated region
    $region38: #{tpu_custom_call.1} parent=1 // pred_check
      _
    $region39: #{tpu_custom_call.1} parent=1 // pred_check_branch
      %803 = sbr.rel (0) target = $region41
    $region40: #{tpu_custom_call.1} parent=1 // pred_region
      %804 = dma.done [#allocation4], 32
    $region41: #{tpu_custom_call.1} parent=1 // pred_fallthru
      _
    %805 = vsyncpa [#allocation3], 1
    %806 = vsyncpa [#allocation6], 1
    %807 = vsyncpa [#allocation4], 1

</llo_original>
